<compile_context>
chip_gen: v5e
topology: v5e:2x2
jax: 0.10.0
libtpu: 0.0.40
codegen_flags: <defaults>
</compile_context>

<pallas_src>
import functools

import jax
import jax.numpy as jnp
from jax.experimental import pallas as pl
from jax.experimental.pallas import tpu as pltpu


def _bottleneck_kernel(x_lo_ref, x_hi_ref, w1_ref, b1_ref, w2_ref, b2_ref,
                       w3_ref, b3_ref, out_ref, h1_scr, im2col_scr, *,
                       last_relu, pad_rows):
    # x_lo_ref:  (1, TH, W, Cin)   bf16  input rows [t*TH, (t+1)*TH)
    # x_hi_ref:  (1, TH, W, Cin)   bf16  next block; only rows 0:2 (halo) used
    # w1_ref:    (Cin, Pp)         bf16  (BN1 scale folded, P padded to 128 lanes)
    # w2_ref:    (9*Pp, Pp)        bf16  (BN2 scale folded, rows ordered (ky,kx,cin))
    # w3_ref:    (Pp, Cin)         bf16  (BN3 scale folded)
    # b*_ref:    (1, C)            f32   (BN shifts)
    # out_ref:   (1, TH, W, Cin)   f32   full-width; column crop happens outside
    # h1_scr:    ((TH+2)*W + 2*pad_rows, Pp) f32  flat staging for the 3x3 taps
    # im2col_scr:(TH*W, 9*Pp)      bf16  lane-blocked im2col fed to one big-K dot
    _, TH, W, Cin = x_lo_ref.shape
    Pp = w1_ref.shape[1]
    HWt = (TH + 2) * W              # staged rows: tile + 2 halo rows
    Rt = TH * W                     # output rows for this tile
    OFS = pad_rows

    # ---- conv1 (1x1) + bn1 shift + relu, on the tile rows and the 2 halo rows
    x_lo = x_lo_ref[0].reshape(TH * W, Cin)
    h1_lo = jnp.dot(x_lo, w1_ref[...], preferred_element_type=jnp.float32)
    h1_lo = jnp.maximum(h1_lo + b1_ref[0], 0.0)
    x_hi = x_hi_ref[0, 0:2, :, :].reshape(2 * W, Cin)
    h1_hi = jnp.dot(x_hi, w1_ref[...], preferred_element_type=jnp.float32)
    h1_hi = jnp.maximum(h1_hi + b1_ref[0], 0.0)

    # Stage h1 flat; only the two small pad blocks are zeroed (they feed only
    # output columns that the wrapper crops away).
    h1_scr[pl.ds(0, OFS), :] = jnp.zeros((OFS, Pp), jnp.float32)
    h1_scr[pl.ds(OFS + HWt, OFS), :] = jnp.zeros((OFS, Pp), jnp.float32)
    h1_scr[pl.ds(OFS, TH * W), :] = h1_lo
    h1_scr[pl.ds(OFS + TH * W, 2 * W), :] = h1_hi

    # ---- conv2 (3x3): nine shifted slab copies into the bf16 im2col scratch
    #      (no value-level concatenate), then a single big-K MXU matmul.
    # Border columns x in {0, W-1} read wrapped/pad rows; safe only because
    # conv3 below is 1x1 (pointwise) and those columns are cropped outside.
    for k in range(9):
        ky, kx = k // 3, k % 3
        delta = (ky - 1) * W + (kx - 1)
        tap = h1_scr[pl.ds(OFS + W + delta, Rt), :]
        im2col_scr[:, pl.ds(k * Pp, Pp)] = tap.astype(jnp.bfloat16)

    h2 = jnp.dot(im2col_scr[...], w2_ref[...],
                 preferred_element_type=jnp.float32)
    h2 = jnp.maximum(h2 + b2_ref[0], 0.0).astype(jnp.bfloat16)     # (Rt, Pp)

    # ---- conv3 (1x1) + bn3 shift -------------------------------------------
    h3 = jnp.dot(h2, w3_ref[...], preferred_element_type=jnp.float32)
    h3 = (h3 + b3_ref[0]).reshape(TH, W, Cin)

    # ---- residual add (input row y_out + 1) + optional relu; full-width store
    out_last = h3[TH - 1] + x_hi_ref[0, 0, :, :].astype(jnp.float32)
    if last_relu:
        out_last = jnp.maximum(out_last, 0.0)
    if TH > 1:
        out_main = h3[:TH - 1] + x_lo_ref[0, 1:TH, :, :].astype(jnp.float32)
        if last_relu:
            out_main = jnp.maximum(out_main, 0.0)
        out_ref[0, :TH - 1, :, :] = out_main
    out_ref[0, TH - 1, :, :] = out_last


def _round_up(v, m):
    return (v + m - 1) // m * m


def _prepare_params(params, lane_multiple=128):
    """Fold BN scales into conv weights, pad planes to a lane multiple, bf16."""
    w1 = params["w1"].astype(jnp.float32)             # (Cin, P)
    w2 = params["w2"].astype(jnp.float32)             # (3, 3, P, P)  HWIO
    w3 = params["w3"].astype(jnp.float32)             # (P, Cin)
    Cin, P = w1.shape
    s1 = params["s1"].astype(jnp.float32); b1 = params["b1"].astype(jnp.float32)
    s2 = params["s2"].astype(jnp.float32); b2 = params["b2"].astype(jnp.float32)
    s3 = params["s3"].astype(jnp.float32); b3 = params["b3"].astype(jnp.float32)

    w1f = w1 * s1[None, :]
    w2f = w2 * s2[None, None, None, :]
    w3f = w3 * s3[None, :]

    Pp = _round_up(P, lane_multiple)
    pp = Pp - P
    w1p = jnp.pad(w1f, ((0, 0), (0, pp))).astype(jnp.bfloat16)             # (Cin, Pp)
    w2p = jnp.pad(w2f, ((0, 0), (0, 0), (0, pp), (0, pp))).astype(jnp.bfloat16)
    w3p = jnp.pad(w3f, ((0, pp), (0, 0))).astype(jnp.bfloat16)             # (Pp, Cin)
    b1p = jnp.pad(b1, (0, pp)).reshape(1, Pp)
    b2p = jnp.pad(b2, (0, pp)).reshape(1, Pp)

    return dict(
        w1=w1p, w2=w2p.reshape(9 * Pp, Pp), w3=w3p,
        b1=b1p, b2=b2p, b3=b3.reshape(1, Cin),
        # un-padded bf16 copies for the bit-matched reference
        w1_np=w1f.astype(jnp.bfloat16), w2_hwio=w2f.astype(jnp.bfloat16),
        w3_np=w3f.astype(jnp.bfloat16))


def _pick_tile_h(ho, max_tile_h):
    """Largest divisor of ho in [2, max_tile_h]; whole image as fallback."""
    best = None
    for t in range(2, min(ho, max_tile_h) + 1):
        if ho % t == 0:
            best = t
    return best if best is not None else ho


def bottleneck_forward(x_nchw, params, *, last_relu=False, max_tile_h=8):
    # NHWC, bf16 activations into the kernel (halves input DMA); residual is
    # added from the bf16 copy and upcast inside the kernel.
    x = jnp.transpose(x_nchw, (0, 2, 3, 1)).astype(jnp.bfloat16)
    N, H, W, Cin = x.shape
    P = params["w1"].shape[1]
    assert Cin == 4 * P, "residual add requires inplanes == planes * expansion"
    assert H >= 4 and W >= 8 and W % 8 == 0, \
        "row-tiled kernel assumes H >= 4 and W a multiple of 8"

    p = _prepare_params(params)
    Pp = p["w1"].shape[1]
    Ho, Wo = H - 2, W - 2
    tile_h = _pick_tile_h(Ho, max_tile_h)
    n_tiles = Ho // tile_h
    pad_rows = 8

    # Pad x along H so the (t+1)-block halo spec never touches a partial block.
    h_padded = (n_tiles + 1) * tile_h
    if h_padded > H:
        x = jnp.pad(x, ((0, 0), (0, h_padded - H), (0, 0), (0, 0)))

    # Per-step VMEM footprint (double-buffered blocks + weights + scratch),
    # used to pick an explicit scoped-VMEM limit with headroom.
    blk_x = tile_h * W * Cin * 2
    blk_out = tile_h * W * Cin * 4
    weight_bytes = (Cin * Pp + 9 * Pp * Pp + Pp * Cin) * 2 + (2 * Pp + Cin) * 4
    scratch_bytes = ((tile_h + 2) * W + 2 * pad_rows) * Pp * 4 \
        + tile_h * W * 9 * Pp * 2
    footprint = 2 * 2 * blk_x + 2 * blk_out + 2 * weight_bytes + scratch_bytes
    vmem_limit = int(min(48 * 2**20, max(16 * 2**20, 3 * footprint)))

    def _full_spec(a):
        nd = a.ndim
        return pl.BlockSpec(a.shape, lambda b, t: (0,) * nd)

    out = pl.pallas_call(
        functools.partial(_bottleneck_kernel, last_relu=last_relu,
                          pad_rows=pad_rows),
        out_shape=jax.ShapeDtypeStruct((N, Ho, W, Cin), jnp.float32),
        grid_spec=pltpu.PrefetchScalarGridSpec(
            num_scalar_prefetch=0,
            grid=(N, n_tiles),
            in_specs=[
                # tile rows [t*tile_h, (t+1)*tile_h)
                pl.BlockSpec((1, tile_h, W, Cin), lambda b, t: (b, t, 0, 0)),
                # next block: its rows 0:2 are this tile's bottom halo
                # TODO(synk): pipeline_mode=pl.Buffered(3) on the x specs if
                #             profiles show exposed input DMA on v7x.
                pl.BlockSpec((1, tile_h, W, Cin), lambda b, t: (b, t + 1, 0, 0)),
                _full_spec(p["w1"]), _full_spec(p["b1"]),
                _full_spec(p["w2"]), _full_spec(p["b2"]),
                _full_spec(p["w3"]), _full_spec(p["b3"]),
            ],
            out_specs=pl.BlockSpec((1, tile_h, W, Cin),
                                   lambda b, t: (b, t, 0, 0)),
            scratch_shapes=[
                pltpu.VMEM(((tile_h + 2) * W + 2 * pad_rows, Pp), jnp.float32),
                pltpu.VMEM((tile_h * W, 9 * Pp), jnp.bfloat16),
            ]),
        compiler_params=pltpu.CompilerParams(
            dimension_semantics=("parallel", "parallel"),
            vmem_limit_bytes=vmem_limit),
    )(x, x, p["w1"], p["b1"], p["w2"], p["b2"], p["w3"], p["b3"])

    out = out[:, :, 1:W - 1, :]                  # column crop (plain XLA slice)
    return jnp.transpose(out, (0, 3, 1, 2))      # back to NCHW


# ------------------------------ references ---------------------------------
def _reference_matched(x_nchw, params, *, last_relu=False):
    """Pure-JAX reference using the SAME bf16 quantization / BN folding."""
    p = _prepare_params(params)
    x = jnp.transpose(x_nchw, (0, 2, 3, 1)).astype(jnp.bfloat16)
    Cin = x.shape[-1]
    P = params["w1"].shape[1]
    dn = ("NHWC", "HWIO", "NHWC")
    conv = jax.lax.conv_general_dilated

    h = conv(x, p["w1_np"].reshape(1, 1, Cin, P), (1, 1), "VALID",
             dimension_numbers=dn, preferred_element_type=jnp.float32)
    h = jnp.maximum(h + p["b1"][:, :P], 0.0)
    h = conv(h.astype(jnp.bfloat16), p["w2_hwio"], (1, 1), ((1, 1), (1, 1)),
             dimension_numbers=dn, preferred_element_type=jnp.float32)
    h = jnp.maximum(h + p["b2"][:, :P], 0.0)
    h = conv(h.astype(jnp.bfloat16), p["w3_np"].reshape(1, 1, P, Cin), (1, 1),
             "VALID", dimension_numbers=dn, preferred_element_type=jnp.float32)
    h = h + p["b3"]
    out = (h + x.astype(jnp.float32))[:, 1:-1, 1:-1, :]
    if last_relu:
        out = jnp.maximum(out, 0.0)
    return jnp.transpose(out, (0, 3, 1, 2))


def _reference_f32(x_nchw, params, *, last_relu=False):
    """Full-precision reference of the original module semantics."""
    x = jnp.transpose(x_nchw, (0, 2, 3, 1)).astype(jnp.float32)
    Cin = x.shape[-1]
    P = params["w1"].shape[1]
    dn = ("NHWC", "HWIO", "NHWC")
    conv = jax.lax.conv_general_dilated

    h = conv(x, params["w1"].reshape(1, 1, Cin, P), (1, 1), "VALID",
             dimension_numbers=dn)
    h = jnp.maximum(h * params["s1"] + params["b1"], 0.0)
    h = conv(h, params["w2"], (1, 1), ((1, 1), (1, 1)), dimension_numbers=dn)
    h = jnp.maximum(h * params["s2"] + params["b2"], 0.0)
    h = conv(h, params["w3"].reshape(1, 1, P, Cin), (1, 1), "VALID",
             dimension_numbers=dn)
    h = h * params["s3"] + params["b3"]
    out = (h + x)[:, 1:-1, 1:-1, :]
    if last_relu:
        out = jnp.maximum(out, 0.0)
    return jnp.transpose(out, (0, 3, 1, 2))


def _fold_bn(gamma, beta, mean, var, eps=1e-5):
    scale = gamma / jnp.sqrt(var + eps)
    shift = beta - mean * scale
    return scale, shift


if __name__ == "__main__":
    # Small deterministic configuration: planes=4 -> inplanes = 4*4 = 16.
    planes, expansion = 4, 4
    inplanes = planes * expansion
    N, H, W = 2, 16, 16

    key = jax.random.PRNGKey(0)
    ks = jax.random.split(key, 16)

    x = jax.random.normal(ks[0], (N, inplanes, H, W), jnp.float32)

    # Conv weights (matmul-friendly layouts, equivalent to OIHW transposed).
    w1 = jax.random.normal(ks[1], (inplanes, planes), jnp.float32) * 0.1
    w2 = jax.random.normal(ks[2], (3, 3, planes, planes), jnp.float32) * 0.1
    w3 = jax.random.normal(ks[3], (planes, inplanes), jnp.float32) * 0.1

    # Synthetic (deterministic) BatchNorm parameters, folded to scale/shift.
    s1, b1 = _fold_bn(jax.random.uniform(ks[4], (planes,), minval=0.5, maxval=1.5),
                      jax.random.normal(ks[5], (planes,)) * 0.1,
                      jax.random.normal(ks[6], (planes,)) * 0.1,
                      jax.random.uniform(ks[7], (planes,), minval=0.5, maxval=1.5))
    s2, b2 = _fold_bn(jax.random.uniform(ks[8], (planes,), minval=0.5, maxval=1.5),
                      jax.random.normal(ks[9], (planes,)) * 0.1,
                      jax.random.normal(ks[10], (planes,)) * 0.1,
                      jax.random.uniform(ks[11], (planes,), minval=0.5, maxval=1.5))
    s3, b3 = _fold_bn(jax.random.uniform(ks[12], (inplanes,), minval=0.5, maxval=1.5),
                      jax.random.normal(ks[13], (inplanes,)) * 0.1,
                      jax.random.normal(ks[14], (inplanes,)) * 0.1,
                      jax.random.uniform(ks[15], (inplanes,), minval=0.5, maxval=1.5))

    params = dict(w1=w1, w2=w2, w3=w3,
                  s1=s1, b1=b1, s2=s2, b2=b2, s3=s3, b3=b3)

    out = bottleneck_forward(x, params, last_relu=False)
    out = jax.block_until_ready(out)
    assert out.shape == (N, inplanes, H - 2, W - 2), out.shape

    # Tight check vs a reference doing the identical bf16 quantization.
    ref_m = _reference_matched(x, params, last_relu=False)
    err_m = float(jnp.max(jnp.abs(out - ref_m)))
    assert jnp.allclose(out, ref_m, atol=5e-3, rtol=5e-3), err_m

    # Loose sanity check vs the full-f32 module semantics.
    ref_f = _reference_f32(x, params, last_relu=False)
    err_f = float(jnp.max(jnp.abs(out - ref_f)))
    assert jnp.allclose(out, ref_f, atol=7e-2, rtol=7e-2), err_f

    print("KERNEL_OK")
</pallas_src>

<mosaic_0001>
module attributes {stable_mosaic.version = 11 : i64} {
  func.func @_bottleneck_kernel(%arg0: i32, %arg1: i32, %arg2: memref<1x7x16x16xbf16, #tpu.memory_space<vmem>>, %arg3: memref<1x7x16x16xbf16, #tpu.memory_space<vmem>>, %arg4: memref<16x128xbf16, #tpu.memory_space<vmem>>, %arg5: memref<1x128xf32, #tpu.memory_space<vmem>>, %arg6: memref<1152x128xbf16, #tpu.memory_space<vmem>>, %arg7: memref<1x128xf32, #tpu.memory_space<vmem>>, %arg8: memref<128x16xbf16, #tpu.memory_space<vmem>>, %arg9: memref<1x16xf32, #tpu.memory_space<vmem>>, %arg10: memref<1x7x16x16xf32, #tpu.memory_space<vmem>>, %arg11: memref<160x128xf32, #tpu.memory_space<vmem>>, %arg12: memref<112x1152xbf16, #tpu.memory_space<vmem>>) attributes {dimension_semantics = [#tpu.dimension_semantics<parallel>, #tpu.dimension_semantics<parallel>], iteration_bounds = array<i64: 2, 2>, scalar_prefetch = 0 : i64, scratch_operands = 2 : i64, tpu.core_type = #tpu.core_type<tc>, window_params = [{transform_indices = @transform_0, window_bounds = array<i64: 1, 7, 16, 16>}, {transform_indices = @transform_1, window_bounds = array<i64: 1, 7, 16, 16>}, {pipeline_mode = #tpu.pipeline_mode<synchronous>, transform_indices = @transform_2, window_bounds = array<i64: 16, 128>}, {pipeline_mode = #tpu.pipeline_mode<synchronous>, transform_indices = @transform_3, window_bounds = array<i64: 1, 128>}, {pipeline_mode = #tpu.pipeline_mode<synchronous>, transform_indices = @transform_4, window_bounds = array<i64: 1152, 128>}, {pipeline_mode = #tpu.pipeline_mode<synchronous>, transform_indices = @transform_5, window_bounds = array<i64: 1, 128>}, {pipeline_mode = #tpu.pipeline_mode<synchronous>, transform_indices = @transform_6, window_bounds = array<i64: 128, 16>}, {pipeline_mode = #tpu.pipeline_mode<synchronous>, transform_indices = @transform_7, window_bounds = array<i64: 1, 16>}, {transform_indices = @transform_8, window_bounds = array<i64: 1, 7, 16, 16>}]} {
    %c0 = arith.constant 0 : index
    %c0_0 = arith.constant 0 : index
    %c0_1 = arith.constant 0 : index
    %c0_2 = arith.constant 0 : index
    %0 = vector.load %arg2[%c0, %c0_0, %c0_1, %c0_2] : memref<1x7x16x16xbf16, #tpu.memory_space<vmem>>, vector<1x7x16x16xbf16>
    %1 = vector.shape_cast %0 : vector<1x7x16x16xbf16> to vector<7x16x16xbf16>
    %2 = vector.shape_cast %1 : vector<7x16x16xbf16> to vector<112x16xbf16>
    %c0_3 = arith.constant 0 : index
    %c0_4 = arith.constant 0 : index
    %3 = vector.load %arg4[%c0_3, %c0_4] : memref<16x128xbf16, #tpu.memory_space<vmem>>, vector<16x128xbf16>
    %cst = arith.constant dense<0.000000e+00> : vector<112x128xf32>
    %4 = tpu.matmul %2, %3, %cst {dimension_numbers = #tpu.dot_dimension_numbers<[1], [0], [0], [1], [0, 0, 1, 1], [], []>} : vector<112x16xbf16>, vector<16x128xbf16>, vector<112x128xf32> -> vector<112x128xf32>
    %c0_5 = arith.constant 0 : index
    %c0_6 = arith.constant 0 : index
    %5 = vector.load %arg5[%c0_5, %c0_6] : memref<1x128xf32, #tpu.memory_space<vmem>>, vector<1x128xf32>
    %6 = vector.shape_cast %5 : vector<1x128xf32> to vector<128xf32>
    %7 = vector.shape_cast %6 : vector<128xf32> to vector<1x128xf32>
    %8 = vector.broadcast %7 : vector<1x128xf32> to vector<112x128xf32>
    %9 = arith.addf %4, %8 : vector<112x128xf32>
    %cst_7 = arith.constant 0.000000e+00 : f32
    %10 = vector.broadcast %cst_7 : f32 to vector<112x128xf32>
    %11 = arith.maximumf %9, %10 : vector<112x128xf32>
    %c0_8 = arith.constant 0 : index
    %c0_9 = arith.constant 0 : index
    %c0_10 = arith.constant 0 : index
    %c0_11 = arith.constant 0 : index
    %12 = vector.load %arg3[%c0_8, %c0_9, %c0_10, %c0_11] : memref<1x7x16x16xbf16, #tpu.memory_space<vmem>>, vector<1x2x16x16xbf16>
    %13 = vector.shape_cast %12 : vector<1x2x16x16xbf16> to vector<2x16x16xbf16>
    %14 = vector.shape_cast %13 : vector<2x16x16xbf16> to vector<32x16xbf16>
    %c0_12 = arith.constant 0 : index
    %c0_13 = arith.constant 0 : index
    %15 = vector.load %arg4[%c0_12, %c0_13] : memref<16x128xbf16, #tpu.memory_space<vmem>>, vector<16x128xbf16>
    %cst_14 = arith.constant dense<0.000000e+00> : vector<32x128xf32>
    %16 = tpu.matmul %14, %15, %cst_14 {dimension_numbers = #tpu.dot_dimension_numbers<[1], [0], [0], [1], [0, 0, 1, 1], [], []>} : vector<32x16xbf16>, vector<16x128xbf16>, vector<32x128xf32> -> vector<32x128xf32>
    %c0_15 = arith.constant 0 : index
    %c0_16 = arith.constant 0 : index
    %17 = vector.load %arg5[%c0_15, %c0_16] : memref<1x128xf32, #tpu.memory_space<vmem>>, vector<1x128xf32>
    %18 = vector.shape_cast %17 : vector<1x128xf32> to vector<128xf32>
    %19 = vector.shape_cast %18 : vector<128xf32> to vector<1x128xf32>
    %20 = vector.broadcast %19 : vector<1x128xf32> to vector<32x128xf32>
    %21 = arith.addf %16, %20 : vector<32x128xf32>
    %cst_17 = arith.constant 0.000000e+00 : f32
    %22 = vector.broadcast %cst_17 : f32 to vector<32x128xf32>
    %23 = arith.maximumf %21, %22 : vector<32x128xf32>
    %cst_18 = arith.constant 0.000000e+00 : f32
    %24 = vector.broadcast %cst_18 : f32 to vector<8x128xf32>
    %c0_19 = arith.constant 0 : index
    %c0_20 = arith.constant 0 : index
    %25 = vector.load %arg11[%c0_19, %c0_20] : memref<160x128xf32, #tpu.memory_space<vmem>>, vector<8x128xf32>
    tpu.vector_store %arg11[%c0_19, %c0_20], %24 {strides = array<i32>} : memref<160x128xf32, #tpu.memory_space<vmem>>, vector<8x128xf32>,
    %cst_21 = arith.constant 0.000000e+00 : f32
    %26 = vector.broadcast %cst_21 : f32 to vector<8x128xf32>
    %c152 = arith.constant 152 : index
    %c0_22 = arith.constant 0 : index
    %27 = vector.load %arg11[%c152, %c0_22] : memref<160x128xf32, #tpu.memory_space<vmem>>, vector<8x128xf32>
    tpu.vector_store %arg11[%c152, %c0_22], %26 {strides = array<i32>} : memref<160x128xf32, #tpu.memory_space<vmem>>, vector<8x128xf32>,
    %c8 = arith.constant 8 : index
    %c0_23 = arith.constant 0 : index
    %28 = vector.load %arg11[%c8, %c0_23] : memref<160x128xf32, #tpu.memory_space<vmem>>, vector<112x128xf32>
    tpu.vector_store %arg11[%c8, %c0_23], %11 {strides = array<i32>} : memref<160x128xf32, #tpu.memory_space<vmem>>, vector<112x128xf32>,
    %c120 = arith.constant 120 : index
    %c0_24 = arith.constant 0 : index
    %29 = vector.load %arg11[%c120, %c0_24] : memref<160x128xf32, #tpu.memory_space<vmem>>, vector<32x128xf32>
    tpu.vector_store %arg11[%c120, %c0_24], %23 {strides = array<i32>} : memref<160x128xf32, #tpu.memory_space<vmem>>, vector<32x128xf32>,
    %c7 = arith.constant 7 : index
    %c0_25 = arith.constant 0 : index
    %30 = vector.load %arg11[%c7, %c0_25] : memref<160x128xf32, #tpu.memory_space<vmem>>, vector<112x128xf32>
    %31 = arith.truncf %30 : vector<112x128xf32> to vector<112x128xbf16>
    %c0_26 = arith.constant 0 : index
    %c0_27 = arith.constant 0 : index
    %32 = vector.load %arg12[%c0_26, %c0_27] : memref<112x1152xbf16, #tpu.memory_space<vmem>>, vector<112x128xbf16>
    tpu.vector_store %arg12[%c0_26, %c0_27], %31 {strides = array<i32>} : memref<112x1152xbf16, #tpu.memory_space<vmem>>, vector<112x128xbf16>,
    %c8_28 = arith.constant 8 : index
    %c0_29 = arith.constant 0 : index
    %33 = vector.load %arg11[%c8_28, %c0_29] : memref<160x128xf32, #tpu.memory_space<vmem>>, vector<112x128xf32>
    %34 = arith.truncf %33 : vector<112x128xf32> to vector<112x128xbf16>
    %c0_30 = arith.constant 0 : index
    %c128 = arith.constant 128 : index
    %35 = vector.load %arg12[%c0_30, %c128] : memref<112x1152xbf16, #tpu.memory_space<vmem>>, vector<112x128xbf16>
    tpu.vector_store %arg12[%c0_30, %c128], %34 {strides = array<i32>} : memref<112x1152xbf16, #tpu.memory_space<vmem>>, vector<112x128xbf16>,
    %c9 = arith.constant 9 : index
    %c0_31 = arith.constant 0 : index
    %36 = vector.load %arg11[%c9, %c0_31] : memref<160x128xf32, #tpu.memory_space<vmem>>, vector<112x128xf32>
    %37 = arith.truncf %36 : vector<112x128xf32> to vector<112x128xbf16>
    %c0_32 = arith.constant 0 : index
    %c256 = arith.constant 256 : index
    %38 = vector.load %arg12[%c0_32, %c256] : memref<112x1152xbf16, #tpu.memory_space<vmem>>, vector<112x128xbf16>
    tpu.vector_store %arg12[%c0_32, %c256], %37 {strides = array<i32>} : memref<112x1152xbf16, #tpu.memory_space<vmem>>, vector<112x128xbf16>,
    %c23 = arith.constant 23 : index
    %c0_33 = arith.constant 0 : index
    %39 = vector.load %arg11[%c23, %c0_33] : memref<160x128xf32, #tpu.memory_space<vmem>>, vector<112x128xf32>
    %40 = arith.truncf %39 : vector<112x128xf32> to vector<112x128xbf16>
    %c0_34 = arith.constant 0 : index
    %c384 = arith.constant 384 : index
    %41 = vector.load %arg12[%c0_34, %c384] : memref<112x1152xbf16, #tpu.memory_space<vmem>>, vector<112x128xbf16>
    tpu.vector_store %arg12[%c0_34, %c384], %40 {strides = array<i32>} : memref<112x1152xbf16, #tpu.memory_space<vmem>>, vector<112x128xbf16>,
    %c24 = arith.constant 24 : index
    %c0_35 = arith.constant 0 : index
    %42 = vector.load %arg11[%c24, %c0_35] : memref<160x128xf32, #tpu.memory_space<vmem>>, vector<112x128xf32>
    %43 = arith.truncf %42 : vector<112x128xf32> to vector<112x128xbf16>
    %c0_36 = arith.constant 0 : index
    %c512 = arith.constant 512 : index
    %44 = vector.load %arg12[%c0_36, %c512] : memref<112x1152xbf16, #tpu.memory_space<vmem>>, vector<112x128xbf16>
    tpu.vector_store %arg12[%c0_36, %c512], %43 {strides = array<i32>} : memref<112x1152xbf16, #tpu.memory_space<vmem>>, vector<112x128xbf16>,
    %c25 = arith.constant 25 : index
    %c0_37 = arith.constant 0 : index
    %45 = vector.load %arg11[%c25, %c0_37] : memref<160x128xf32, #tpu.memory_space<vmem>>, vector<112x128xf32>
    %46 = arith.truncf %45 : vector<112x128xf32> to vector<112x128xbf16>
    %c0_38 = arith.constant 0 : index
    %c640 = arith.constant 640 : index
    %47 = vector.load %arg12[%c0_38, %c640] : memref<112x1152xbf16, #tpu.memory_space<vmem>>, vector<112x128xbf16>
    tpu.vector_store %arg12[%c0_38, %c640], %46 {strides = array<i32>} : memref<112x1152xbf16, #tpu.memory_space<vmem>>, vector<112x128xbf16>,
    %c39 = arith.constant 39 : index
    %c0_39 = arith.constant 0 : index
    %48 = vector.load %arg11[%c39, %c0_39] : memref<160x128xf32, #tpu.memory_space<vmem>>, vector<112x128xf32>
    %49 = arith.truncf %48 : vector<112x128xf32> to vector<112x128xbf16>
    %c0_40 = arith.constant 0 : index
    %c768 = arith.constant 768 : index
    %50 = vector.load %arg12[%c0_40, %c768] : memref<112x1152xbf16, #tpu.memory_space<vmem>>, vector<112x128xbf16>
    tpu.vector_store %arg12[%c0_40, %c768], %49 {strides = array<i32>} : memref<112x1152xbf16, #tpu.memory_space<vmem>>, vector<112x128xbf16>,
    %c40 = arith.constant 40 : index
    %c0_41 = arith.constant 0 : index
    %51 = vector.load %arg11[%c40, %c0_41] : memref<160x128xf32, #tpu.memory_space<vmem>>, vector<112x128xf32>
    %52 = arith.truncf %51 : vector<112x128xf32> to vector<112x128xbf16>
    %c0_42 = arith.constant 0 : index
    %c896 = arith.constant 896 : index
    %53 = vector.load %arg12[%c0_42, %c896] : memref<112x1152xbf16, #tpu.memory_space<vmem>>, vector<112x128xbf16>
    tpu.vector_store %arg12[%c0_42, %c896], %52 {strides = array<i32>} : memref<112x1152xbf16, #tpu.memory_space<vmem>>, vector<112x128xbf16>,
    %c41 = arith.constant 41 : index
    %c0_43 = arith.constant 0 : index
    %54 = vector.load %arg11[%c41, %c0_43] : memref<160x128xf32, #tpu.memory_space<vmem>>, vector<112x128xf32>
    %55 = arith.truncf %54 : vector<112x128xf32> to vector<112x128xbf16>
    %c0_44 = arith.constant 0 : index
    %c1024 = arith.constant 1024 : index
    %56 = vector.load %arg12[%c0_44, %c1024] : memref<112x1152xbf16, #tpu.memory_space<vmem>>, vector<112x128xbf16>
    tpu.vector_store %arg12[%c0_44, %c1024], %55 {strides = array<i32>} : memref<112x1152xbf16, #tpu.memory_space<vmem>>, vector<112x128xbf16>,
    %c0_45 = arith.constant 0 : index
    %c0_46 = arith.constant 0 : index
    %57 = vector.load %arg12[%c0_45, %c0_46] : memref<112x1152xbf16, #tpu.memory_space<vmem>>, vector<112x1152xbf16>
    %c0_47 = arith.constant 0 : index
    %c0_48 = arith.constant 0 : index
    %58 = vector.load %arg6[%c0_47, %c0_48] : memref<1152x128xbf16, #tpu.memory_space<vmem>>, vector<1152x128xbf16>
    %cst_49 = arith.constant dense<0.000000e+00> : vector<112x128xf32>
    %59 = tpu.matmul %57, %58, %cst_49 {dimension_numbers = #tpu.dot_dimension_numbers<[1], [0], [0], [1], [0, 0, 1, 1], [], []>} : vector<112x1152xbf16>, vector<1152x128xbf16>, vector<112x128xf32> -> vector<112x128xf32>
    %c0_50 = arith.constant 0 : index
    %c0_51 = arith.constant 0 : index
    %60 = vector.load %arg7[%c0_50, %c0_51] : memref<1x128xf32, #tpu.memory_space<vmem>>, vector<1x128xf32>
    %61 = vector.shape_cast %60 : vector<1x128xf32> to vector<128xf32>
    %62 = vector.shape_cast %61 : vector<128xf32> to vector<1x128xf32>
    %63 = vector.broadcast %62 : vector<1x128xf32> to vector<112x128xf32>
    %64 = arith.addf %59, %63 : vector<112x128xf32>
    %cst_52 = arith.constant 0.000000e+00 : f32
    %65 = vector.broadcast %cst_52 : f32 to vector<112x128xf32>
    %66 = arith.maximumf %64, %65 : vector<112x128xf32>
    %67 = arith.truncf %66 : vector<112x128xf32> to vector<112x128xbf16>
    %c0_53 = arith.constant 0 : index
    %c0_54 = arith.constant 0 : index
    %68 = vector.load %arg8[%c0_53, %c0_54] : memref<128x16xbf16, #tpu.memory_space<vmem>>, vector<128x16xbf16>
    %cst_55 = arith.constant dense<0.000000e+00> : vector<112x16xf32>
    %69 = tpu.matmul %67, %68, %cst_55 {dimension_numbers = #tpu.dot_dimension_numbers<[1], [0], [0], [1], [0, 0, 1, 1], [], []>} : vector<112x128xbf16>, vector<128x16xbf16>, vector<112x16xf32> -> vector<112x16xf32>
    %c0_56 = arith.constant 0 : index
    %c0_57 = arith.constant 0 : index
    %70 = vector.load %arg9[%c0_56, %c0_57] : memref<1x16xf32, #tpu.memory_space<vmem>>, vector<1x16xf32>
    %71 = vector.shape_cast %70 : vector<1x16xf32> to vector<16xf32>
    %72 = vector.shape_cast %71 : vector<16xf32> to vector<1x16xf32>
    %73 = vector.broadcast %72 : vector<1x16xf32> to vector<112x16xf32>
    %74 = arith.addf %69, %73 : vector<112x16xf32>
    %75 = vector.shape_cast %74 : vector<112x16xf32> to vector<7x16x16xf32>
    %76 = vector.extract_strided_slice %75 {offsets = [6, 0, 0], sizes = [1, 16, 16], strides = [1, 1, 1]} : vector<7x16x16xf32> to vector<1x16x16xf32>
    %77 = vector.shape_cast %76 : vector<1x16x16xf32> to vector<16x16xf32>
    %c0_58 = arith.constant 0 : index
    %c0_59 = arith.constant 0 : index
    %c0_60 = arith.constant 0 : index
    %c0_61 = arith.constant 0 : index
    %78 = vector.load %arg3[%c0_58, %c0_59, %c0_60, %c0_61] : memref<1x7x16x16xbf16, #tpu.memory_space<vmem>>, vector<1x1x16x16xbf16>
    %79 = vector.shape_cast %78 : vector<1x1x16x16xbf16> to vector<16x16xbf16>
    %80 = arith.extf %79 : vector<16x16xbf16> to vector<16x16xf32>
    %81 = arith.addf %77, %80 : vector<16x16xf32>
    %82 = vector.extract_strided_slice %75 {offsets = [0, 0, 0], sizes = [6, 16, 16], strides = [1, 1, 1]} : vector<7x16x16xf32> to vector<6x16x16xf32>
    %c0_62 = arith.constant 0 : index
    %c1 = arith.constant 1 : index
    %c0_63 = arith.constant 0 : index
    %c0_64 = arith.constant 0 : index
    %83 = vector.load %arg2[%c0_62, %c1, %c0_63, %c0_64] : memref<1x7x16x16xbf16, #tpu.memory_space<vmem>>, vector<1x6x16x16xbf16>
    %84 = vector.shape_cast %83 : vector<1x6x16x16xbf16> to vector<6x16x16xbf16>
    %85 = arith.extf %84 : vector<6x16x16xbf16> to vector<6x16x16xf32>
    %86 = arith.addf %82, %85 : vector<6x16x16xf32>
    %c0_65 = arith.constant 0 : index
    %c0_66 = arith.constant 0 : index
    %c0_67 = arith.constant 0 : index
    %c0_68 = arith.constant 0 : index
    %87 = vector.load %arg10[%c0_65, %c0_66, %c0_67, %c0_68] : memref<1x7x16x16xf32, #tpu.memory_space<vmem>>, vector<1x6x16x16xf32>
    %88 = vector.shape_cast %87 : vector<1x6x16x16xf32> to vector<6x16x16xf32>
    %89 = vector.shape_cast %86 : vector<6x16x16xf32> to vector<1x6x16x16xf32>
    tpu.vector_store %arg10[%c0_65, %c0_66, %c0_67, %c0_68], %89 {strides = array<i32>} : memref<1x7x16x16xf32, #tpu.memory_space<vmem>>, vector<1x6x16x16xf32>,
    %c0_69 = arith.constant 0 : index
    %c6 = arith.constant 6 : index
    %c0_70 = arith.constant 0 : index
    %c0_71 = arith.constant 0 : index
    %90 = vector.load %arg10[%c0_69, %c6, %c0_70, %c0_71] : memref<1x7x16x16xf32, #tpu.memory_space<vmem>>, vector<1x1x16x16xf32>
    %91 = vector.shape_cast %90 : vector<1x1x16x16xf32> to vector<16x16xf32>
    %92 = vector.shape_cast %81 : vector<16x16xf32> to vector<1x1x16x16xf32>
    tpu.vector_store %arg10[%c0_69, %c6, %c0_70, %c0_71], %92 {strides = array<i32>} : memref<1x7x16x16xf32, #tpu.memory_space<vmem>>, vector<1x1x16x16xf32>,
    return
  }
  func.func @transform_0(%arg0: i32, %arg1: i32) -> (i32, i32, i32, i32) {
    %c0_i32 = arith.constant 0 : i32
    %c0_i32_0 = arith.constant 0 : i32
    %c0_i32_1 = arith.constant 0 : i32
    return %arg0, %arg1, %c0_i32, %c0_i32_0 : i32, i32, i32, i32
  }
  func.func @transform_1(%arg0: i32, %arg1: i32) -> (i32, i32, i32, i32) {
    %c1_i32 = arith.constant 1 : i32
    %0 = arith.addi %arg1, %c1_i32 : i32
    %c0_i32 = arith.constant 0 : i32
    %c0_i32_0 = arith.constant 0 : i32
    %c0_i32_1 = arith.constant 0 : i32
    return %arg0, %0, %c0_i32, %c0_i32_0 : i32, i32, i32, i32
  }
  func.func @transform_2(%arg0: i32, %arg1: i32) -> (i32, i32) {
    %c0_i32 = arith.constant 0 : i32
    %c0_i32_0 = arith.constant 0 : i32
    %c0_i32_1 = arith.constant 0 : i32
    return %c0_i32, %c0_i32_0 : i32, i32
  }
  func.func @transform_3(%arg0: i32, %arg1: i32) -> (i32, i32) {
    %c0_i32 = arith.constant 0 : i32
    %c0_i32_0 = arith.constant 0 : i32
    %c0_i32_1 = arith.constant 0 : i32
    return %c0_i32, %c0_i32_0 : i32, i32
  }
  func.func @transform_4(%arg0: i32, %arg1: i32) -> (i32, i32) {
    %c0_i32 = arith.constant 0 : i32
    %c0_i32_0 = arith.constant 0 : i32
    %c0_i32_1 = arith.constant 0 : i32
    return %c0_i32, %c0_i32_0 : i32, i32
  }
  func.func @transform_5(%arg0: i32, %arg1: i32) -> (i32, i32) {
    %c0_i32 = arith.constant 0 : i32
    %c0_i32_0 = arith.constant 0 : i32
    %c0_i32_1 = arith.constant 0 : i32
    return %c0_i32, %c0_i32_0 : i32, i32
  }
  func.func @transform_6(%arg0: i32, %arg1: i32) -> (i32, i32) {
    %c0_i32 = arith.constant 0 : i32
    %c0_i32_0 = arith.constant 0 : i32
    %c0_i32_1 = arith.constant 0 : i32
    return %c0_i32, %c0_i32_0 : i32, i32
  }
  func.func @transform_7(%arg0: i32, %arg1: i32) -> (i32, i32) {
    %c0_i32 = arith.constant 0 : i32
    %c0_i32_0 = arith.constant 0 : i32
    %c0_i32_1 = arith.constant 0 : i32
    return %c0_i32, %c0_i32_0 : i32, i32
  }
  func.func @transform_8(%arg0: i32, %arg1: i32) -> (i32, i32, i32, i32) {
    %c0_i32 = arith.constant 0 : i32
    %c0_i32_0 = arith.constant 0 : i32
    %c0_i32_1 = arith.constant 0 : i32
    return %arg0, %arg1, %c0_i32, %c0_i32_0 : i32, i32, i32, i32
  }
}

</mosaic_0001>

<llo_original>
// kernel: tpu_custom_call.1
$region0: #{tpu_custom_call.1}
  #allocation0 [shape = 'u32[]', space=smem, size = 0x4, offset = 0x4, fixed_abs, tag = 'smem constant byte address 0x4 - core index']
  #allocation1 [shape = 'u32[72,128]{1,0:T(1,128)}', space=vmem, size = 0x9000, scoped, tag = 'internal scratch']
  #allocation2 [shape = 'f32[160,128]{1,0:T(8,128)}', space=vmem, size = 0x14000, scoped, tag = 'scratch operand']
  #allocation3 [shape = 'bf16[112,1152]{1,0:T(8,128)(2,1)}', space=vmem, size = 0x3f000, scoped, tag = 'scratch operand']
  %s0 = inlined_call_operand.vmem [shape: bf16[2,21,16,16], index: 0, kind: input, shape index: {}]
  %s1 = inlined_call_operand.vmem [shape: bf16[2,21,16,16], index: 1, kind: input, shape index: {}]
  %s2 = inlined_call_operand.vmem [shape: bf16[16,128], index: 2, kind: input, shape index: {}]
  %s3 = inlined_call_operand.vmem [shape: f32[1,128], index: 3, kind: input, shape index: {}]
  %s4 = inlined_call_operand.vmem [shape: bf16[1152,128], index: 4, kind: input, shape index: {}]
  %s5 = inlined_call_operand.vmem [shape: f32[1,128], index: 5, kind: input, shape index: {}]
  %s6 = inlined_call_operand.vmem [shape: bf16[128,16], index: 6, kind: input, shape index: {}]
  %s7 = inlined_call_operand.vmem [shape: f32[1,16], index: 7, kind: input, shape index: {}]
  %s8 = inlined_call_operand.hbm [shape: f32[2,14,16,16], index: 8, kind: output, shape index: {}]
  %s9 = sld [smem:[#allocation0]]
  $region65: #{tpu_custom_call.1} parent=0
    _
  %s11 = ssub.s32 1, %s9
  %s12 = scalar_select 0, %s11, %s9
  $region1: #{tpu_custom_call.1} parent=0
    #allocation4 [shape = 'u8[114688]{0}', space=vmem, size = 0x1c000, scoped, tag = 'output window, operand 0']
    #allocation5 [shape = 's32[2]{0}', space=sflag, size = 0x8, scoped, tag = 'scoped memory for tpu_custom_call.1']
    %13 = vsyncpa [#allocation5], 0
    %s14 = scalar_lea.sflag [#allocation5], 1
    %15 = vsyncpa %s14, 0
    loop: start=0, step=1, limit=6
    $region2: #{tpu_custom_call.1} parent=1 // loop_pre_header
      _
    $region3: #{tpu_custom_call.1} parent=1 // loop_header
      %s17 = sphi 0, %s21
      %p18 = scmp.ge.s32.totalorder %s17, 6
      %s24 = sphi 0, %s36
      %s25 = sphi 0, %s32
      %s26 = sphi 0, %s24
      %s27 = sphi 0, %s25
      %s28 = sphi 0, %s26
      %s29 = sphi 0, %s27
      %s41 = sphi 0, %s43
      %s44 = sphi 0, %s41
      %s45 = sphi 0, %s44
      %s61 = sphi 0, %s45
      %s71 = sphi 0, %s73
      %s74 = sphi 0, %s71
      %s75 = sphi 0, %s74
      %s91 = sphi 0, %s75
      %s95 = sphi 0, %s95
      %s97 = sphi 0, %s95
      %s98 = sphi 0, %s97
      %s112 = sphi 0, %s98
      %s116 = sphi 0, %s116
      %s118 = sphi 0, %s116
      %s119 = sphi 0, %s118
      %s133 = sphi 0, %s119
      %s137 = sphi 0, %s137
      %s139 = sphi 0, %s137
      %s140 = sphi 0, %s139
      %s154 = sphi 0, %s140
      %s158 = sphi 0, %s158
      %s160 = sphi 0, %s158
      %s161 = sphi 0, %s160
      %s175 = sphi 0, %s161
      %s179 = sphi 0, %s179
      %s181 = sphi 0, %s179
      %s182 = sphi 0, %s181
      %s196 = sphi 0, %s182
      %s200 = sphi 0, %s200
      %s202 = sphi 0, %s200
      %s203 = sphi 0, %s202
      %s217 = sphi 0, %s203
      %s225 = sphi 0, %s227
      %s228 = sphi 0, %s225
      %s229 = sphi 0, %s228
      %s245 = sphi 0, %s229
    $region4: #{tpu_custom_call.1} parent=1 // loop_header_branch
      %20 = sbr.rel (%p18) target = $region8
    $region5: #{tpu_custom_call.1} parent=1 // loop_body
      %s22 = ssub.s32 %s17, 1
      %s23 = ssub.s32 %s17, 2
      %s30 = sadd.s32 1, %s25
      %p31 = scmp.ge.s32.totalorder %s30, 2
      %s32 = scalar_select %p31, 0, %s30
      %s33 = sadd.s32 1, %s24
      %s34 = scalar_select %p31, %s33, %s24
      %p35 = scmp.ge.s32.totalorder %s34, 2
      %s36 = scalar_select %p35, 0, %s34
      %s37 = ssub.s32 %s24, %s36
      %s38 = ssub.s32 %s25, %s32
      %s39 = sor.u32 %s37, %s38
      %p40 = scmp.eq.s32.totalorder %s39, 0
      %s42 = sadd.s32 %s41, 1
      %s43 = scalar_select %p40, %s41, %s42
      %p46 = pneg %p40
      %p47 = scmp.eq.s32.totalorder %s17, 3
      %p48 = por %p46, %p47
      %p49 = scmp.ne.s32.totalorder %s41, %s44
      %p50 = scmp.eq.s32.totalorder %s17, 0
      %p51 = por %p49, %p50
      %p52 = scmp.ne.s32.totalorder %s41, %s44
      %p53 = scmp.eq.s32.totalorder %s22, 3
      %p54 = por %p52, %p53
      %p55 = scmp.ne.s32.totalorder %s44, %s45
      %p56 = scmp.eq.s32.totalorder %s22, 0
      %p57 = por %p55, %p56
      %p58 = scmp.ne.s32.totalorder %s44, %s45
      %p59 = scmp.eq.s32.totalorder %s23, 3
      %p60 = por %p58, %p59
      %p62 = scmp.ne.s32.totalorder %s45, %s61
      %p63 = scmp.eq.s32.totalorder %s23, 0
      %p64 = por %p62, %p63
      %s65 = sadd.s32 %s25, 1
      %s66 = sadd.s32 %s32, 1
      %s67 = ssub.s32 %s24, %s36
      %s68 = ssub.s32 %s65, %s66
      %s69 = sor.u32 %s67, %s68
      %p70 = scmp.eq.s32.totalorder %s69, 0
      %s72 = sadd.s32 %s71, 1
      %s73 = scalar_select %p70, %s71, %s72
      %p76 = pneg %p70
      %p77 = scmp.eq.s32.totalorder %s17, 3
      %p78 = por %p76, %p77
      %p79 = scmp.ne.s32.totalorder %s71, %s74
      %p80 = scmp.eq.s32.totalorder %s17, 0
      %p81 = por %p79, %p80
      %p82 = scmp.ne.s32.totalorder %s71, %s74
      %p83 = scmp.eq.s32.totalorder %s22, 3
      %p84 = por %p82, %p83
      %p85 = scmp.ne.s32.totalorder %s74, %s75
      %p86 = scmp.eq.s32.totalorder %s22, 0
      %p87 = por %p85, %p86
      %p88 = scmp.ne.s32.totalorder %s74, %s75
      %p89 = scmp.eq.s32.totalorder %s23, 3
      %p90 = por %p88, %p89
      %p92 = scmp.ne.s32.totalorder %s75, %s91
      %p93 = scmp.eq.s32.totalorder %s23, 0
      %p94 = por %p92, %p93
      %s96 = sadd.s32 %s95, 1
      %p99 = scmp.eq.s32.totalorder %s17, 3
      %p100 = scmp.ne.s32.totalorder %s95, %s97
      %p101 = scmp.eq.s32.totalorder %s17, 0
      %p102 = por %p100, %p101
      %p103 = scmp.ne.s32.totalorder %s95, %s97
      %p104 = scmp.eq.s32.totalorder %s22, 3
      %p105 = por %p103, %p104
      %p106 = scmp.ne.s32.totalorder %s97, %s98
      %p107 = scmp.eq.s32.totalorder %s22, 0
      %p108 = por %p106, %p107
      %p109 = scmp.ne.s32.totalorder %s97, %s98
      %p110 = scmp.eq.s32.totalorder %s23, 3
      %p111 = por %p109, %p110
      %p113 = scmp.ne.s32.totalorder %s98, %s112
      %p114 = scmp.eq.s32.totalorder %s23, 0
      %p115 = por %p113, %p114
      %s117 = sadd.s32 %s116, 1
      %p120 = scmp.eq.s32.totalorder %s17, 3
      %p121 = scmp.ne.s32.totalorder %s116, %s118
      %p122 = scmp.eq.s32.totalorder %s17, 0
      %p123 = por %p121, %p122
      %p124 = scmp.ne.s32.totalorder %s116, %s118
      %p125 = scmp.eq.s32.totalorder %s22, 3
      %p126 = por %p124, %p125
      %p127 = scmp.ne.s32.totalorder %s118, %s119
      %p128 = scmp.eq.s32.totalorder %s22, 0
      %p129 = por %p127, %p128
      %p130 = scmp.ne.s32.totalorder %s118, %s119
      %p131 = scmp.eq.s32.totalorder %s23, 3
      %p132 = por %p130, %p131
      %p134 = scmp.ne.s32.totalorder %s119, %s133
      %p135 = scmp.eq.s32.totalorder %s23, 0
      %p136 = por %p134, %p135
      %s138 = sadd.s32 %s137, 1
      %p141 = scmp.eq.s32.totalorder %s17, 3
      %p142 = scmp.ne.s32.totalorder %s137, %s139
      %p143 = scmp.eq.s32.totalorder %s17, 0
      %p144 = por %p142, %p143
      %p145 = scmp.ne.s32.totalorder %s137, %s139
      %p146 = scmp.eq.s32.totalorder %s22, 3
      %p147 = por %p145, %p146
      %p148 = scmp.ne.s32.totalorder %s139, %s140
      %p149 = scmp.eq.s32.totalorder %s22, 0
      %p150 = por %p148, %p149
      %p151 = scmp.ne.s32.totalorder %s139, %s140
      %p152 = scmp.eq.s32.totalorder %s23, 3
      %p153 = por %p151, %p152
      %p155 = scmp.ne.s32.totalorder %s140, %s154
      %p156 = scmp.eq.s32.totalorder %s23, 0
      %p157 = por %p155, %p156
      %s159 = sadd.s32 %s158, 1
      %p162 = scmp.eq.s32.totalorder %s17, 3
      %p163 = scmp.ne.s32.totalorder %s158, %s160
      %p164 = scmp.eq.s32.totalorder %s17, 0
      %p165 = por %p163, %p164
      %p166 = scmp.ne.s32.totalorder %s158, %s160
      %p167 = scmp.eq.s32.totalorder %s22, 3
      %p168 = por %p166, %p167
      %p169 = scmp.ne.s32.totalorder %s160, %s161
      %p170 = scmp.eq.s32.totalorder %s22, 0
      %p171 = por %p169, %p170
      %p172 = scmp.ne.s32.totalorder %s160, %s161
      %p173 = scmp.eq.s32.totalorder %s23, 3
      %p174 = por %p172, %p173
      %p176 = scmp.ne.s32.totalorder %s161, %s175
      %p177 = scmp.eq.s32.totalorder %s23, 0
      %p178 = por %p176, %p177
      %s180 = sadd.s32 %s179, 1
      %p183 = scmp.eq.s32.totalorder %s17, 3
      %p184 = scmp.ne.s32.totalorder %s179, %s181
      %p185 = scmp.eq.s32.totalorder %s17, 0
      %p186 = por %p184, %p185
      %p187 = scmp.ne.s32.totalorder %s179, %s181
      %p188 = scmp.eq.s32.totalorder %s22, 3
      %p189 = por %p187, %p188
      %p190 = scmp.ne.s32.totalorder %s181, %s182
      %p191 = scmp.eq.s32.totalorder %s22, 0
      %p192 = por %p190, %p191
      %p193 = scmp.ne.s32.totalorder %s181, %s182
      %p194 = scmp.eq.s32.totalorder %s23, 3
      %p195 = por %p193, %p194
      %p197 = scmp.ne.s32.totalorder %s182, %s196
      %p198 = scmp.eq.s32.totalorder %s23, 0
      %p199 = por %p197, %p198
      %s201 = sadd.s32 %s200, 1
      %p204 = scmp.eq.s32.totalorder %s17, 3
      %p205 = scmp.ne.s32.totalorder %s200, %s202
      %p206 = scmp.eq.s32.totalorder %s17, 0
      %p207 = por %p205, %p206
      %p208 = scmp.ne.s32.totalorder %s200, %s202
      %p209 = scmp.eq.s32.totalorder %s22, 3
      %p210 = por %p208, %p209
      %p211 = scmp.ne.s32.totalorder %s202, %s203
      %p212 = scmp.eq.s32.totalorder %s22, 0
      %p213 = por %p211, %p212
      %p214 = scmp.ne.s32.totalorder %s202, %s203
      %p215 = scmp.eq.s32.totalorder %s23, 3
      %p216 = por %p214, %p215
      %p218 = scmp.ne.s32.totalorder %s203, %s217
      %p219 = scmp.eq.s32.totalorder %s23, 0
      %p220 = por %p218, %p219
      %s221 = ssub.s32 %s24, %s36
      %s222 = ssub.s32 %s25, %s32
      %s223 = sor.u32 %s221, %s222
      %p224 = scmp.eq.s32.totalorder %s223, 0
      %s226 = sadd.s32 %s225, 1
      %s227 = scalar_select %p224, %s225, %s226
      %p230 = pneg %p224
      %p231 = scmp.eq.s32.totalorder %s17, 3
      %p232 = por %p230, %p231
      %p233 = scmp.ne.s32.totalorder %s225, %s228
      %p234 = scmp.eq.s32.totalorder %s17, 0
      %p235 = por %p233, %p234
      %p236 = scmp.ne.s32.totalorder %s225, %s228
      %p237 = scmp.eq.s32.totalorder %s22, 3
      %p238 = por %p236, %p237
      %p239 = scmp.ne.s32.totalorder %s228, %s229
      %p240 = scmp.eq.s32.totalorder %s22, 0
      %p241 = por %p239, %p240
      %p242 = scmp.ne.s32.totalorder %s228, %s229
      %p243 = scmp.eq.s32.totalorder %s23, 3
      %p244 = por %p242, %p243
      %p246 = scmp.ne.s32.totalorder %s229, %s245
      %p247 = scmp.eq.s32.totalorder %s23, 0
      %p248 = por %p246, %p247
      %p249 = scmp.le.s32.totalorder 1, %s17
      %p250 = scmp.lt.s32.totalorder %s17, 5
      %p251 = pnand %p249, %p250
      %p252 = pneg %p251
      // Predicated region
      $region9: #{tpu_custom_call.1} parent=5 // pred_check
        _
      $region10: #{tpu_custom_call.1} parent=5 // pred_check_branch
        %254 = sbr.rel (%p251) target = $region12
      $region11: #{tpu_custom_call.1} parent=5 // pred_region
        %s255 = ssub.s32 %s17, 1
        // Predicated region
        $region13: #{tpu_custom_call.1} parent=11 // pred_check
          %p256 = pneg %p108
        $region14: #{tpu_custom_call.1} parent=11 // pred_check_branch
          %258 = sbr.rel (%p256) target = $region16
        $region15: #{tpu_custom_call.1} parent=11 // pred_region
          _
        $region16: #{tpu_custom_call.1} parent=11 // pred_fallthru
          _
        // Predicated region
        $region17: #{tpu_custom_call.1} parent=11 // pred_check
          %p259 = pneg %p129
        $region18: #{tpu_custom_call.1} parent=11 // pred_check_branch
          %261 = sbr.rel (%p259) target = $region20
        $region19: #{tpu_custom_call.1} parent=11 // pred_region
          _
        $region20: #{tpu_custom_call.1} parent=11 // pred_fallthru
          _
        // Predicated region
        $region21: #{tpu_custom_call.1} parent=11 // pred_check
          %p262 = pneg %p150
        $region22: #{tpu_custom_call.1} parent=11 // pred_check_branch
          %264 = sbr.rel (%p262) target = $region24
        $region23: #{tpu_custom_call.1} parent=11 // pred_region
          _
        $region24: #{tpu_custom_call.1} parent=11 // pred_fallthru
          _
        // Predicated region
        $region25: #{tpu_custom_call.1} parent=11 // pred_check
          %p265 = pneg %p171
        $region26: #{tpu_custom_call.1} parent=11 // pred_check_branch
          %267 = sbr.rel (%p265) target = $region28
        $region27: #{tpu_custom_call.1} parent=11 // pred_region
          _
        $region28: #{tpu_custom_call.1} parent=11 // pred_fallthru
          _
        // Predicated region
        $region29: #{tpu_custom_call.1} parent=11 // pred_check
          %p268 = pneg %p192
        $region30: #{tpu_custom_call.1} parent=11 // pred_check_branch
          %270 = sbr.rel (%p268) target = $region32
        $region31: #{tpu_custom_call.1} parent=11 // pred_region
          _
        $region32: #{tpu_custom_call.1} parent=11 // pred_fallthru
          _
        // Predicated region
        $region33: #{tpu_custom_call.1} parent=11 // pred_check
          %p271 = pneg %p213
        $region34: #{tpu_custom_call.1} parent=11 // pred_check_branch
          %273 = sbr.rel (%p271) target = $region36
        $region35: #{tpu_custom_call.1} parent=11 // pred_region
          _
        $region36: #{tpu_custom_call.1} parent=11 // pred_fallthru
          _
      $region12: #{tpu_custom_call.1} parent=5 // pred_fallthru
        _
      %p274 = scmp.lt.s32.totalorder %s17, 4
      // Predicated region
      $region37: #{tpu_custom_call.1} parent=5 // pred_check
        %p275 = pneg %p274
      $region38: #{tpu_custom_call.1} parent=5 // pred_check_branch
        %277 = sbr.rel (%p275) target = $region40
      $region39: #{tpu_custom_call.1} parent=5 // pred_region
        // Predicated region
        $region41: #{tpu_custom_call.1} parent=39 // pred_check
          %p278 = pneg %p51
        $region42: #{tpu_custom_call.1} parent=39 // pred_check_branch
          %280 = sbr.rel (%p278) target = $region44
        $region43: #{tpu_custom_call.1} parent=39 // pred_region
          %s281 = smul.u32 7, %s25
          %p282 = scmp.lt.s32.totalorder %s24, 1
          %s283 = scalar_select %p282, %s24, 1
          %p284 = scmp.lt.s32.totalorder %s281, 20
          %s285 = scalar_select %p284, %s281, 20
          %s286 = smul.addr %s285, 2
          %s287 = smul.addr %s283, 42
          %s288 = sadd.s32 %s286, %s287
          %s289 = smul.addr %s288, 4
          %s290 = scalar_lea.vmem %s0, %s289
          %s291 = smul.u32 7, %s25
        $region44: #{tpu_custom_call.1} parent=39 // pred_fallthru
          _
        // Predicated region
        $region45: #{tpu_custom_call.1} parent=39 // pred_check
          %p292 = pneg %p81
        $region46: #{tpu_custom_call.1} parent=39 // pred_check_branch
          %294 = sbr.rel (%p292) target = $region48
        $region47: #{tpu_custom_call.1} parent=39 // pred_region
          %s295 = sadd.s32 %s25, 1
          %s296 = smul.u32 7, %s295
          %p297 = scmp.lt.s32.totalorder %s24, 1
          %s298 = scalar_select %p297, %s24, 1
          %p299 = scmp.lt.s32.totalorder %s296, 20
          %s300 = scalar_select %p299, %s296, 20
          %s301 = smul.addr %s300, 2
          %s302 = smul.addr %s298, 42
          %s303 = sadd.s32 %s301, %s302
          %s304 = smul.addr %s303, 4
          %s305 = scalar_lea.vmem %s1, %s304
          %s306 = sadd.s32 %s25, 1
          %s307 = smul.u32 7, %s306
        $region48: #{tpu_custom_call.1} parent=39 // pred_fallthru
          _
      $region40: #{tpu_custom_call.1} parent=5 // pred_fallthru
        _
      %p308 = scmp.le.s32.totalorder 1, %s17
      %p309 = scmp.lt.s32.totalorder %s17, 5
      %p310 = pnand %p308, %p309
      %p311 = pneg %p310
      // Predicated region
      $region49: #{tpu_custom_call.1} parent=5 // pred_check
        _
      $region50: #{tpu_custom_call.1} parent=5 // pred_check_branch
        %313 = sbr.rel (%p310) target = $region52
      $region51: #{tpu_custom_call.1} parent=5 // pred_region
        %s314 = ssub.s32 %s17, 1
        %s315 = smul.u32 7, %s27
        %p316 = scmp.lt.s32.totalorder %s26, 1
        %s317 = scalar_select %p316, %s26, 1
        %p318 = scmp.lt.s32.totalorder %s315, 20
        %s319 = scalar_select %p318, %s315, 20
        %s320 = smul.addr %s319, 2
        %s321 = smul.addr %s317, 42
        %s322 = sadd.s32 %s320, %s321
        %s323 = smul.addr %s322, 4
        %s324 = scalar_lea.vmem %s0, %s323
        %p325 = pneg %p57
        %p326 = pneg %p54
        %s327 = sadd.s32 %s27, 1
        %s328 = smul.u32 7, %s327
        %p329 = scmp.lt.s32.totalorder %s26, 1
        %s330 = scalar_select %p329, %s26, 1
        %p331 = scmp.lt.s32.totalorder %s328, 20
        %s332 = scalar_select %p331, %s328, 20
        %s333 = smul.addr %s332, 2
        %s334 = smul.addr %s330, 42
        %s335 = sadd.s32 %s333, %s334
        %s336 = smul.addr %s335, 4
        %s337 = scalar_lea.vmem %s1, %s336
        %p338 = pneg %p87
        %p339 = pneg %p84
        %p340 = pneg %p108
        %p341 = pneg %p105
        %p342 = pneg %p129
        %p343 = pneg %p126
        %p344 = pneg %p150
        %p345 = pneg %p147
        %p346 = pneg %p171
        %p347 = pneg %p168
        %p348 = pneg %p192
        %p349 = pneg %p189
        %p350 = pneg %p213
        %p351 = pneg %p210
        %p352 = pneg %p241
        %p353 = pneg %p238
        %s354 = sand.u32 %s228, 1
        %s355 = scalar_lea.sflag [#allocation5], %s354
        %s356 = sand.u32 %s228, 1
        %s357 = smul.addr %s356, 112
        %s358 = scalar_lea.vmem [#allocation4], %s357
        %s359 = smul.u32 7, %s27
        %p360 = scmp.lt.s32.totalorder %s26, 1
        %s361 = scalar_select %p360, %s26, 1
        %p362 = scmp.lt.s32.totalorder %s359, 20
        %s363 = scalar_select %p362, %s359, 20
        %s364 = smul.addr %s363, 2
        %s365 = smul.addr %s361, 42
        %s366 = sadd.s32 %s364, %s365
        %s367 = smul.addr %s366, 4
        %s368 = scalar_lea.vmem %s0, %s367
        %s369 = smul.u32 7, %s27
        %s370 = sadd.s32 %s27, 1
        %s371 = smul.u32 7, %s370
        %p372 = scmp.lt.s32.totalorder %s26, 1
        %s373 = scalar_select %p372, %s26, 1
        %p374 = scmp.lt.s32.totalorder %s371, 20
        %s375 = scalar_select %p374, %s371, 20
        %s376 = smul.addr %s375, 2
        %s377 = smul.addr %s373, 42
        %s378 = sadd.s32 %s376, %s377
        %s379 = smul.addr %s378, 4
        %s380 = scalar_lea.vmem %s1, %s379
        %s381 = sadd.s32 %s27, 1
        %s382 = smul.u32 7, %s381
        %s383 = smul.u32 7, %s27
        %v385 = vld [vmem:[%s368] sm:$0xf]
        %v386 = vld [vmem:[%s368 + $0x4] sm:$0xf]
        %v387 = vld [vmem:[%s368 + $0x8] sm:$0xf]
        %v388 = vld [vmem:[%s368 + $0xc] sm:$0xf]
        %v389 = vld [vmem:[%s368 + $0x10] sm:$0xf]
        %v390 = vld [vmem:[%s368 + $0x14] sm:$0xf]
        %v391 = vld [vmem:[%s368 + $0x18] sm:$0xf]
        %v392 = vld [vmem:[%s368 + $0x1c] sm:$0xf]
        %v393 = vld [vmem:[%s368 + $0x20] sm:$0xf]
        %v394 = vld [vmem:[%s368 + $0x24] sm:$0xf]
        %v395 = vld [vmem:[%s368 + $0x28] sm:$0xf]
        %v396 = vld [vmem:[%s368 + $0x2c] sm:$0xf]
        %v397 = vld [vmem:[%s368 + $0x30] sm:$0xf]
        %v398 = vld [vmem:[%s368 + $0x34] sm:$0xf]
        %v399 = vld [vmem:[%s2] sm:$0xf]
        %v400 = vld [vmem:[%s2 + $0x4] sm:$0xf]
        %v401 = vld [vmem:[%s3] sm:$0x1]
        %v403 = vperm.slane %v401, 0
        %v419 = vunpack.c.l.b16 %v385
        %v420 = vunpack.c.l.b16 %v386
        %v421 = vunpack.c.l.b16 %v387
        %v422 = vunpack.c.l.b16 %v388
        %v423 = vunpack.c.l.b16 %v389
        %v424 = vunpack.c.l.b16 %v390
        %v425 = vunpack.c.l.b16 %v391
        %v426 = vunpack.c.l.b16 %v392
        %v427 = vunpack.c.l.b16 %v393
        %v428 = vunpack.c.l.b16 %v394
        %v429 = vunpack.c.l.b16 %v395
        %v430 = vunpack.c.l.b16 %v396
        %v431 = vunpack.c.l.b16 %v397
        %v432 = vunpack.c.l.b16 %v398
        %v433 = vpack.c.b16 %v420, %v419
        %v434 = vpack.c.b16 %v422, %v421
        %v435 = vpack.c.b16 %v424, %v423
        %v436 = vpack.c.b16 %v426, %v425
        %v437 = vpack.c.b16 %v428, %v427
        %v438 = vpack.c.b16 %v430, %v429
        %v439 = vpack.c.b16 %v432, %v431
        %v442 = vunpack.c.l.b16 %v399
        %v443 = vunpack.c.l.b16 %v400
        %v444 = vpack.c.b16 %v443, %v442
        %vm446 = vcmask 130048
        %v448 = vsel %vm446, %v433, 0
        %v451 = vsel %vm446, %v434, 0
        %v454 = vsel %vm446, %v435, 0
        %v457 = vsel %vm446, %v436, 0
        %v460 = vsel %vm446, %v437, 0
        %v463 = vsel %vm446, %v438, 0
        %v466 = vsel %vm446, %v439, 0
        %468 = vmatpush.bf16.msra.mxu0 0
        %469 = vmatpush.bf16.msra.mxu0 0
        %470 = vmatpush.bf16.msra.mxu0 0
        %471 = vmatpush.bf16.msra.mxu0 0
        %472 = vmatpush.bf16.msra.mxu0 0
        %473 = vmatpush.bf16.msra.mxu0 0
        %474 = vmatpush.bf16.msra.mxu0 0
        %475 = vmatpush.bf16.msra.mxu0 %v444
        %476 = vmatmul.bf16.gmra.mxu0 %v448
        %v477 = vpop.f32.mrf.mxu0
        %v478 = vadd.f32 %v403, %v477
        %v479 = vpop.f32.mrf.mxu0
        %v480 = vadd.f32 %v403, %v479
        %481 = vmatmul.bf16.gmra.mxu0 %v451
        %v482 = vpop.f32.mrf.mxu0
        %v483 = vadd.f32 %v403, %v482
        %v484 = vpop.f32.mrf.mxu0
        %v485 = vadd.f32 %v403, %v484
        %486 = vmatmul.bf16.gmra.mxu0 %v454
        %v487 = vpop.f32.mrf.mxu0
        %v488 = vadd.f32 %v403, %v487
        %v489 = vpop.f32.mrf.mxu0
        %v490 = vadd.f32 %v403, %v489
        %491 = vmatmul.bf16.gmra.mxu0 %v457
        %v492 = vpop.f32.mrf.mxu0
        %v493 = vadd.f32 %v403, %v492
        %v494 = vpop.f32.mrf.mxu0
        %v495 = vadd.f32 %v403, %v494
        %496 = vmatmul.bf16.gmra.mxu0 %v460
        %v497 = vpop.f32.mrf.mxu0
        %v498 = vadd.f32 %v403, %v497
        %v499 = vpop.f32.mrf.mxu0
        %v500 = vadd.f32 %v403, %v499
        %501 = vmatmul.bf16.gmra.mxu0 %v463
        %v502 = vpop.f32.mrf.mxu0
        %v503 = vadd.f32 %v403, %v502
        %v504 = vpop.f32.mrf.mxu0
        %v505 = vadd.f32 %v403, %v504
        %506 = vmatmul.bf16.gmra.mxu0 %v466
        %v507 = vpop.f32.mrf.mxu0
        %v508 = vadd.f32 %v403, %v507
        %v509 = vpop.f32.mrf.mxu0
        %v510 = vadd.f32 %v403, %v509
        %511 = vdwg.mxu0
        %v512 = vmax.f32 %v478, 0.0
        %v513 = vmax.f32 %v480, 0.0
        %v514 = vmax.f32 %v483, 0.0
        %v515 = vmax.f32 %v485, 0.0
        %v516 = vmax.f32 %v488, 0.0
        %v517 = vmax.f32 %v490, 0.0
        %v518 = vmax.f32 %v493, 0.0
        %v519 = vmax.f32 %v495, 0.0
        %v520 = vmax.f32 %v498, 0.0
        %v521 = vmax.f32 %v500, 0.0
        %v522 = vmax.f32 %v503, 0.0
        %v523 = vmax.f32 %v505, 0.0
        %v524 = vmax.f32 %v508, 0.0
        %v525 = vmax.f32 %v510, 0.0
        %v526 = vld [vmem:[%s380] sm:$0xf]
        %v527 = vld [vmem:[%s380 + $0x4] sm:$0xf]
        %v528 = vld [vmem:[%s380 + $0x8] sm:$0xf]
        %v529 = vld [vmem:[%s380 + $0xc] sm:$0xf]
        %v534 = vunpack.c.l.b16 %v526
        %v535 = vunpack.c.l.b16 %v527
        %v536 = vunpack.c.l.b16 %v528
        %v537 = vunpack.c.l.b16 %v529
        %v538 = vpack.c.b16 %v535, %v534
        %v539 = vpack.c.b16 %v537, %v536
        %v541 = vsel %vm446, %v538, 0
        %v544 = vsel %vm446, %v539, 0
        %546 = vmatpush.bf16.msra.mxu0 0
        %547 = vmatpush.bf16.msra.mxu0 0
        %548 = vmatpush.bf16.msra.mxu0 0
        %549 = vmatpush.bf16.msra.mxu0 0
        %550 = vmatpush.bf16.msra.mxu0 0
        %551 = vmatpush.bf16.msra.mxu0 0
        %552 = vmatpush.bf16.msra.mxu0 0
        %553 = vmatpush.bf16.msra.mxu0 %v444
        %554 = vmatmul.bf16.gmra.mxu0 %v541
        %v555 = vpop.f32.mrf.mxu0
        %v556 = vadd.f32 %v403, %v555
        %v557 = vpop.f32.mrf.mxu0
        %v558 = vadd.f32 %v403, %v557
        %559 = vmatmul.bf16.gmra.mxu0 %v544
        %v560 = vpop.f32.mrf.mxu0
        %v561 = vadd.f32 %v403, %v560
        %v562 = vpop.f32.mrf.mxu0
        %v563 = vadd.f32 %v403, %v562
        %564 = vdwg.mxu0
        %v565 = vmax.f32 %v556, 0.0
        %v566 = vmax.f32 %v558, 0.0
        %v567 = vmax.f32 %v561, 0.0
        %v568 = vmax.f32 %v563, 0.0
        %569 = vst [vmem:[#allocation2] sm:$0xff] 0.0
        %570 = vst [vmem:[#allocation2 + $0x98] sm:$0xff] 0.0
        %571 = vst [vmem:[#allocation2 + $0x8] sm:$0xff] %v512
        %572 = vst [vmem:[#allocation2 + $0x10] sm:$0xff] %v513
        %573 = vst [vmem:[#allocation2 + $0x18] sm:$0xff] %v514
        %574 = vst [vmem:[#allocation2 + $0x20] sm:$0xff] %v515
        %575 = vst [vmem:[#allocation2 + $0x28] sm:$0xff] %v516
        %576 = vst [vmem:[#allocation2 + $0x30] sm:$0xff] %v517
        %577 = vst [vmem:[#allocation2 + $0x38] sm:$0xff] %v518
        %578 = vst [vmem:[#allocation2 + $0x40] sm:$0xff] %v519
        %579 = vst [vmem:[#allocation2 + $0x48] sm:$0xff] %v520
        %580 = vst [vmem:[#allocation2 + $0x50] sm:$0xff] %v521
        %581 = vst [vmem:[#allocation2 + $0x58] sm:$0xff] %v522
        %582 = vst [vmem:[#allocation2 + $0x60] sm:$0xff] %v523
        %583 = vst [vmem:[#allocation2 + $0x68] sm:$0xff] %v524
        %584 = vst [vmem:[#allocation2 + $0x70] sm:$0xff] %v525
        %585 = vst [vmem:[#allocation2 + $0x78] sm:$0xff] %v565
        %586 = vst [vmem:[#allocation2 + $0x80] sm:$0xff] %v566
        %587 = vst [vmem:[#allocation2 + $0x88] sm:$0xff] %v567
        %588 = vst [vmem:[#allocation2 + $0x90] sm:$0xff] %v568
        %v589 = vld [vmem:[#allocation2 + $0x7] sm:$0xff]
        %v590 = vld [vmem:[#allocation2 + $0xf] sm:$0xff]
        %v591 = vld [vmem:[#allocation2 + $0x17] sm:$0xff]
        %v592 = vld [vmem:[#allocation2 + $0x1f] sm:$0xff]
        %v593 = vld [vmem:[#allocation2 + $0x27] sm:$0xff]
        %v594 = vld [vmem:[#allocation2 + $0x2f] sm:$0xff]
        %v595 = vld [vmem:[#allocation2 + $0x37] sm:$0xff]
        %v596 = vld [vmem:[#allocation2 + $0x3f] sm:$0xff]
        %v597 = vld [vmem:[#allocation2 + $0x47] sm:$0xff]
        %v598 = vld [vmem:[#allocation2 + $0x4f] sm:$0xff]
        %v599 = vld [vmem:[#allocation2 + $0x57] sm:$0xff]
        %v600 = vld [vmem:[#allocation2 + $0x5f] sm:$0xff]
        %v601 = vld [vmem:[#allocation2 + $0x67] sm:$0xff]
        %v602 = vld [vmem:[#allocation2 + $0x6f] sm:$0xff]
        %v603 = vpack.c.bf16 %v589, %v589
        %v604 = vpack.c.bf16 %v590, %v590
        %v605 = vpack.c.bf16 %v591, %v591
        %v606 = vpack.c.bf16 %v592, %v592
        %v607 = vpack.c.bf16 %v593, %v593
        %v608 = vpack.c.bf16 %v594, %v594
        %v609 = vpack.c.bf16 %v595, %v595
        %v610 = vpack.c.bf16 %v596, %v596
        %v611 = vpack.c.bf16 %v597, %v597
        %v612 = vpack.c.bf16 %v598, %v598
        %v613 = vpack.c.bf16 %v599, %v599
        %v614 = vpack.c.bf16 %v600, %v600
        %v615 = vpack.c.bf16 %v601, %v601
        %v616 = vpack.c.bf16 %v602, %v602
        %617 = vst [vmem:[#allocation3] sm:$0xf] %v603
        %618 = vst [vmem:[#allocation3 + $0x24] sm:$0xf] %v604
        %619 = vst [vmem:[#allocation3 + $0x48] sm:$0xf] %v605
        %620 = vst [vmem:[#allocation3 + $0x6c] sm:$0xf] %v606
        %621 = vst [vmem:[#allocation3 + $0x90] sm:$0xf] %v607
        %622 = vst [vmem:[#allocation3 + $0xb4] sm:$0xf] %v608
        %623 = vst [vmem:[#allocation3 + $0xd8] sm:$0xf] %v609
        %624 = vst [vmem:[#allocation3 + $0xfc] sm:$0xf] %v610
        %625 = vst [vmem:[#allocation3 + $0x120] sm:$0xf] %v611
        %626 = vst [vmem:[#allocation3 + $0x144] sm:$0xf] %v612
        %627 = vst [vmem:[#allocation3 + $0x168] sm:$0xf] %v613
        %628 = vst [vmem:[#allocation3 + $0x18c] sm:$0xf] %v614
        %629 = vst [vmem:[#allocation3 + $0x1b0] sm:$0xf] %v615
        %630 = vst [vmem:[#allocation3 + $0x1d4] sm:$0xf] %v616
        %v631 = vld [vmem:[#allocation2 + $0x8] sm:$0xff]
        %v632 = vld [vmem:[#allocation2 + $0x10] sm:$0xff]
        %v633 = vld [vmem:[#allocation2 + $0x18] sm:$0xff]
        %v634 = vld [vmem:[#allocation2 + $0x20] sm:$0xff]
        %v635 = vld [vmem:[#allocation2 + $0x28] sm:$0xff]
        %v636 = vld [vmem:[#allocation2 + $0x30] sm:$0xff]
        %v637 = vld [vmem:[#allocation2 + $0x38] sm:$0xff]
        %v638 = vld [vmem:[#allocation2 + $0x40] sm:$0xff]
        %v639 = vld [vmem:[#allocation2 + $0x48] sm:$0xff]
        %v640 = vld [vmem:[#allocation2 + $0x50] sm:$0xff]
        %v641 = vld [vmem:[#allocation2 + $0x58] sm:$0xff]
        %v642 = vld [vmem:[#allocation2 + $0x60] sm:$0xff]
        %v643 = vld [vmem:[#allocation2 + $0x68] sm:$0xff]
        %v644 = vld [vmem:[#allocation2 + $0x70] sm:$0xff]
        %v645 = vpack.c.bf16 %v631, %v631
        %v646 = vpack.c.bf16 %v632, %v632
        %v647 = vpack.c.bf16 %v633, %v633
        %v648 = vpack.c.bf16 %v634, %v634
        %v649 = vpack.c.bf16 %v635, %v635
        %v650 = vpack.c.bf16 %v636, %v636
        %v651 = vpack.c.bf16 %v637, %v637
        %v652 = vpack.c.bf16 %v638, %v638
        %v653 = vpack.c.bf16 %v639, %v639
        %v654 = vpack.c.bf16 %v640, %v640
        %v655 = vpack.c.bf16 %v641, %v641
        %v656 = vpack.c.bf16 %v642, %v642
        %v657 = vpack.c.bf16 %v643, %v643
        %v658 = vpack.c.bf16 %v644, %v644
        %659 = vst [vmem:[#allocation3 + $0x4] sm:$0xf] %v645
        %660 = vst [vmem:[#allocation3 + $0x28] sm:$0xf] %v646
        %661 = vst [vmem:[#allocation3 + $0x4c] sm:$0xf] %v647
        %662 = vst [vmem:[#allocation3 + $0x70] sm:$0xf] %v648
        %663 = vst [vmem:[#allocation3 + $0x94] sm:$0xf] %v649
        %664 = vst [vmem:[#allocation3 + $0xb8] sm:$0xf] %v650
        %665 = vst [vmem:[#allocation3 + $0xdc] sm:$0xf] %v651
        %666 = vst [vmem:[#allocation3 + $0x100] sm:$0xf] %v652
        %667 = vst [vmem:[#allocation3 + $0x124] sm:$0xf] %v653
        %668 = vst [vmem:[#allocation3 + $0x148] sm:$0xf] %v654
        %669 = vst [vmem:[#allocation3 + $0x16c] sm:$0xf] %v655
        %670 = vst [vmem:[#allocation3 + $0x190] sm:$0xf] %v656
        %671 = vst [vmem:[#allocation3 + $0x1b4] sm:$0xf] %v657
        %672 = vst [vmem:[#allocation3 + $0x1d8] sm:$0xf] %v658
        %v673 = vld [vmem:[#allocation2 + $0x9] sm:$0xff]
        %v674 = vld [vmem:[#allocation2 + $0x11] sm:$0xff]
        %v675 = vld [vmem:[#allocation2 + $0x19] sm:$0xff]
        %v676 = vld [vmem:[#allocation2 + $0x21] sm:$0xff]
        %v677 = vld [vmem:[#allocation2 + $0x29] sm:$0xff]
        %v678 = vld [vmem:[#allocation2 + $0x31] sm:$0xff]
        %v679 = vld [vmem:[#allocation2 + $0x39] sm:$0xff]
        %v680 = vld [vmem:[#allocation2 + $0x41] sm:$0xff]
        %v681 = vld [vmem:[#allocation2 + $0x49] sm:$0xff]
        %v682 = vld [vmem:[#allocation2 + $0x51] sm:$0xff]
        %v683 = vld [vmem:[#allocation2 + $0x59] sm:$0xff]
        %v684 = vld [vmem:[#allocation2 + $0x61] sm:$0xff]
        %v685 = vld [vmem:[#allocation2 + $0x69] sm:$0xff]
        %v686 = vld [vmem:[#allocation2 + $0x71] sm:$0xff]
        %v687 = vpack.c.bf16 %v673, %v673
        %v688 = vpack.c.bf16 %v674, %v674
        %v689 = vpack.c.bf16 %v675, %v675
        %v690 = vpack.c.bf16 %v676, %v676
        %v691 = vpack.c.bf16 %v677, %v677
        %v692 = vpack.c.bf16 %v678, %v678
        %v693 = vpack.c.bf16 %v679, %v679
        %v694 = vpack.c.bf16 %v680, %v680
        %v695 = vpack.c.bf16 %v681, %v681
        %v696 = vpack.c.bf16 %v682, %v682
        %v697 = vpack.c.bf16 %v683, %v683
        %v698 = vpack.c.bf16 %v684, %v684
        %v699 = vpack.c.bf16 %v685, %v685
        %v700 = vpack.c.bf16 %v686, %v686
        %701 = vst [vmem:[#allocation3 + $0x8] sm:$0xf] %v687
        %702 = vst [vmem:[#allocation3 + $0x2c] sm:$0xf] %v688
        %703 = vst [vmem:[#allocation3 + $0x50] sm:$0xf] %v689
        %704 = vst [vmem:[#allocation3 + $0x74] sm:$0xf] %v690
        %705 = vst [vmem:[#allocation3 + $0x98] sm:$0xf] %v691
        %706 = vst [vmem:[#allocation3 + $0xbc] sm:$0xf] %v692
        %707 = vst [vmem:[#allocation3 + $0xe0] sm:$0xf] %v693
        %708 = vst [vmem:[#allocation3 + $0x104] sm:$0xf] %v694
        %709 = vst [vmem:[#allocation3 + $0x128] sm:$0xf] %v695
        %710 = vst [vmem:[#allocation3 + $0x14c] sm:$0xf] %v696
        %711 = vst [vmem:[#allocation3 + $0x170] sm:$0xf] %v697
        %712 = vst [vmem:[#allocation3 + $0x194] sm:$0xf] %v698
        %713 = vst [vmem:[#allocation3 + $0x1b8] sm:$0xf] %v699
        %714 = vst [vmem:[#allocation3 + $0x1dc] sm:$0xf] %v700
        %v715 = vld [vmem:[#allocation2 + $0x17] sm:$0xff]
        %v716 = vld [vmem:[#allocation2 + $0x1f] sm:$0xff]
        %v717 = vld [vmem:[#allocation2 + $0x27] sm:$0xff]
        %v718 = vld [vmem:[#allocation2 + $0x2f] sm:$0xff]
        %v719 = vld [vmem:[#allocation2 + $0x37] sm:$0xff]
        %v720 = vld [vmem:[#allocation2 + $0x3f] sm:$0xff]
        %v721 = vld [vmem:[#allocation2 + $0x47] sm:$0xff]
        %v722 = vld [vmem:[#allocation2 + $0x4f] sm:$0xff]
        %v723 = vld [vmem:[#allocation2 + $0x57] sm:$0xff]
        %v724 = vld [vmem:[#allocation2 + $0x5f] sm:$0xff]
        %v725 = vld [vmem:[#allocation2 + $0x67] sm:$0xff]
        %v726 = vld [vmem:[#allocation2 + $0x6f] sm:$0xff]
        %v727 = vld [vmem:[#allocation2 + $0x77] sm:$0xff]
        %v728 = vld [vmem:[#allocation2 + $0x7f] sm:$0xff]
        %v729 = vpack.c.bf16 %v715, %v715
        %v730 = vpack.c.bf16 %v716, %v716
        %v731 = vpack.c.bf16 %v717, %v717
        %v732 = vpack.c.bf16 %v718, %v718
        %v733 = vpack.c.bf16 %v719, %v719
        %v734 = vpack.c.bf16 %v720, %v720
        %v735 = vpack.c.bf16 %v721, %v721
        %v736 = vpack.c.bf16 %v722, %v722
        %v737 = vpack.c.bf16 %v723, %v723
        %v738 = vpack.c.bf16 %v724, %v724
        %v739 = vpack.c.bf16 %v725, %v725
        %v740 = vpack.c.bf16 %v726, %v726
        %v741 = vpack.c.bf16 %v727, %v727
        %v742 = vpack.c.bf16 %v728, %v728
        %743 = vst [vmem:[#allocation3 + $0xc] sm:$0xf] %v729
        %744 = vst [vmem:[#allocation3 + $0x30] sm:$0xf] %v730
        %745 = vst [vmem:[#allocation3 + $0x54] sm:$0xf] %v731
        %746 = vst [vmem:[#allocation3 + $0x78] sm:$0xf] %v732
        %747 = vst [vmem:[#allocation3 + $0x9c] sm:$0xf] %v733
        %748 = vst [vmem:[#allocation3 + $0xc0] sm:$0xf] %v734
        %749 = vst [vmem:[#allocation3 + $0xe4] sm:$0xf] %v735
        %750 = vst [vmem:[#allocation3 + $0x108] sm:$0xf] %v736
        %751 = vst [vmem:[#allocation3 + $0x12c] sm:$0xf] %v737
        %752 = vst [vmem:[#allocation3 + $0x150] sm:$0xf] %v738
        %753 = vst [vmem:[#allocation3 + $0x174] sm:$0xf] %v739
        %754 = vst [vmem:[#allocation3 + $0x198] sm:$0xf] %v740
        %755 = vst [vmem:[#allocation3 + $0x1bc] sm:$0xf] %v741
        %756 = vst [vmem:[#allocation3 + $0x1e0] sm:$0xf] %v742
        %v757 = vld [vmem:[#allocation2 + $0x18] sm:$0xff]
        %v758 = vld [vmem:[#allocation2 + $0x20] sm:$0xff]
        %v759 = vld [vmem:[#allocation2 + $0x28] sm:$0xff]
        %v760 = vld [vmem:[#allocation2 + $0x30] sm:$0xff]
        %v761 = vld [vmem:[#allocation2 + $0x38] sm:$0xff]
        %v762 = vld [vmem:[#allocation2 + $0x40] sm:$0xff]
        %v763 = vld [vmem:[#allocation2 + $0x48] sm:$0xff]
        %v764 = vld [vmem:[#allocation2 + $0x50] sm:$0xff]
        %v765 = vld [vmem:[#allocation2 + $0x58] sm:$0xff]
        %v766 = vld [vmem:[#allocation2 + $0x60] sm:$0xff]
        %v767 = vld [vmem:[#allocation2 + $0x68] sm:$0xff]
        %v768 = vld [vmem:[#allocation2 + $0x70] sm:$0xff]
        %v769 = vld [vmem:[#allocation2 + $0x78] sm:$0xff]
        %v770 = vld [vmem:[#allocation2 + $0x80] sm:$0xff]
        %v771 = vpack.c.bf16 %v757, %v757
        %v772 = vpack.c.bf16 %v758, %v758
        %v773 = vpack.c.bf16 %v759, %v759
        %v774 = vpack.c.bf16 %v760, %v760
        %v775 = vpack.c.bf16 %v761, %v761
        %v776 = vpack.c.bf16 %v762, %v762
        %v777 = vpack.c.bf16 %v763, %v763
        %v778 = vpack.c.bf16 %v764, %v764
        %v779 = vpack.c.bf16 %v765, %v765
        %v780 = vpack.c.bf16 %v766, %v766
        %v781 = vpack.c.bf16 %v767, %v767
        %v782 = vpack.c.bf16 %v768, %v768
        %v783 = vpack.c.bf16 %v769, %v769
        %v784 = vpack.c.bf16 %v770, %v770
        %785 = vst [vmem:[#allocation3 + $0x10] sm:$0xf] %v771
        %786 = vst [vmem:[#allocation3 + $0x34] sm:$0xf] %v772
        %787 = vst [vmem:[#allocation3 + $0x58] sm:$0xf] %v773
        %788 = vst [vmem:[#allocation3 + $0x7c] sm:$0xf] %v774
        %789 = vst [vmem:[#allocation3 + $0xa0] sm:$0xf] %v775
        %790 = vst [vmem:[#allocation3 + $0xc4] sm:$0xf] %v776
        %791 = vst [vmem:[#allocation3 + $0xe8] sm:$0xf] %v777
        %792 = vst [vmem:[#allocation3 + $0x10c] sm:$0xf] %v778
        %793 = vst [vmem:[#allocation3 + $0x130] sm:$0xf] %v779
        %794 = vst [vmem:[#allocation3 + $0x154] sm:$0xf] %v780
        %795 = vst [vmem:[#allocation3 + $0x178] sm:$0xf] %v781
        %796 = vst [vmem:[#allocation3 + $0x19c] sm:$0xf] %v782
        %797 = vst [vmem:[#allocation3 + $0x1c0] sm:$0xf] %v783
        %798 = vst [vmem:[#allocation3 + $0x1e4] sm:$0xf] %v784
        %v799 = vld [vmem:[#allocation2 + $0x19] sm:$0xff]
        %v800 = vld [vmem:[#allocation2 + $0x21] sm:$0xff]
        %v801 = vld [vmem:[#allocation2 + $0x29] sm:$0xff]
        %v802 = vld [vmem:[#allocation2 + $0x31] sm:$0xff]
        %v803 = vld [vmem:[#allocation2 + $0x39] sm:$0xff]
        %v804 = vld [vmem:[#allocation2 + $0x41] sm:$0xff]
        %v805 = vld [vmem:[#allocation2 + $0x49] sm:$0xff]
        %v806 = vld [vmem:[#allocation2 + $0x51] sm:$0xff]
        %v807 = vld [vmem:[#allocation2 + $0x59] sm:$0xff]
        %v808 = vld [vmem:[#allocation2 + $0x61] sm:$0xff]
        %v809 = vld [vmem:[#allocation2 + $0x69] sm:$0xff]
        %v810 = vld [vmem:[#allocation2 + $0x71] sm:$0xff]
        %v811 = vld [vmem:[#allocation2 + $0x79] sm:$0xff]
        %v812 = vld [vmem:[#allocation2 + $0x81] sm:$0xff]
        %v813 = vpack.c.bf16 %v799, %v799
        %v814 = vpack.c.bf16 %v800, %v800
        %v815 = vpack.c.bf16 %v801, %v801
        %v816 = vpack.c.bf16 %v802, %v802
        %v817 = vpack.c.bf16 %v803, %v803
        %v818 = vpack.c.bf16 %v804, %v804
        %v819 = vpack.c.bf16 %v805, %v805
        %v820 = vpack.c.bf16 %v806, %v806
        %v821 = vpack.c.bf16 %v807, %v807
        %v822 = vpack.c.bf16 %v808, %v808
        %v823 = vpack.c.bf16 %v809, %v809
        %v824 = vpack.c.bf16 %v810, %v810
        %v825 = vpack.c.bf16 %v811, %v811
        %v826 = vpack.c.bf16 %v812, %v812
        %827 = vst [vmem:[#allocation3 + $0x14] sm:$0xf] %v813
        %828 = vst [vmem:[#allocation3 + $0x38] sm:$0xf] %v814
        %829 = vst [vmem:[#allocation3 + $0x5c] sm:$0xf] %v815
        %830 = vst [vmem:[#allocation3 + $0x80] sm:$0xf] %v816
        %831 = vst [vmem:[#allocation3 + $0xa4] sm:$0xf] %v817
        %832 = vst [vmem:[#allocation3 + $0xc8] sm:$0xf] %v818
        %833 = vst [vmem:[#allocation3 + $0xec] sm:$0xf] %v819
        %834 = vst [vmem:[#allocation3 + $0x110] sm:$0xf] %v820
        %835 = vst [vmem:[#allocation3 + $0x134] sm:$0xf] %v821
        %836 = vst [vmem:[#allocation3 + $0x158] sm:$0xf] %v822
        %837 = vst [vmem:[#allocation3 + $0x17c] sm:$0xf] %v823
        %838 = vst [vmem:[#allocation3 + $0x1a0] sm:$0xf] %v824
        %839 = vst [vmem:[#allocation3 + $0x1c4] sm:$0xf] %v825
        %840 = vst [vmem:[#allocation3 + $0x1e8] sm:$0xf] %v826
        %v841 = vld [vmem:[#allocation2 + $0x27] sm:$0xff]
        %v842 = vld [vmem:[#allocation2 + $0x2f] sm:$0xff]
        %v843 = vld [vmem:[#allocation2 + $0x37] sm:$0xff]
        %v844 = vld [vmem:[#allocation2 + $0x3f] sm:$0xff]
        %v845 = vld [vmem:[#allocation2 + $0x47] sm:$0xff]
        %v846 = vld [vmem:[#allocation2 + $0x4f] sm:$0xff]
        %v847 = vld [vmem:[#allocation2 + $0x57] sm:$0xff]
        %v848 = vld [vmem:[#allocation2 + $0x5f] sm:$0xff]
        %v849 = vld [vmem:[#allocation2 + $0x67] sm:$0xff]
        %v850 = vld [vmem:[#allocation2 + $0x6f] sm:$0xff]
        %v851 = vld [vmem:[#allocation2 + $0x77] sm:$0xff]
        %v852 = vld [vmem:[#allocation2 + $0x7f] sm:$0xff]
        %v853 = vld [vmem:[#allocation2 + $0x87] sm:$0xff]
        %v854 = vld [vmem:[#allocation2 + $0x8f] sm:$0xff]
        %v855 = vpack.c.bf16 %v841, %v841
        %v856 = vpack.c.bf16 %v842, %v842
        %v857 = vpack.c.bf16 %v843, %v843
        %v858 = vpack.c.bf16 %v844, %v844
        %v859 = vpack.c.bf16 %v845, %v845
        %v860 = vpack.c.bf16 %v846, %v846
        %v861 = vpack.c.bf16 %v847, %v847
        %v862 = vpack.c.bf16 %v848, %v848
        %v863 = vpack.c.bf16 %v849, %v849
        %v864 = vpack.c.bf16 %v850, %v850
        %v865 = vpack.c.bf16 %v851, %v851
        %v866 = vpack.c.bf16 %v852, %v852
        %v867 = vpack.c.bf16 %v853, %v853
        %v868 = vpack.c.bf16 %v854, %v854
        %869 = vst [vmem:[#allocation3 + $0x18] sm:$0xf] %v855
        %870 = vst [vmem:[#allocation3 + $0x3c] sm:$0xf] %v856
        %871 = vst [vmem:[#allocation3 + $0x60] sm:$0xf] %v857
        %872 = vst [vmem:[#allocation3 + $0x84] sm:$0xf] %v858
        %873 = vst [vmem:[#allocation3 + $0xa8] sm:$0xf] %v859
        %874 = vst [vmem:[#allocation3 + $0xcc] sm:$0xf] %v860
        %875 = vst [vmem:[#allocation3 + $0xf0] sm:$0xf] %v861
        %876 = vst [vmem:[#allocation3 + $0x114] sm:$0xf] %v862
        %877 = vst [vmem:[#allocation3 + $0x138] sm:$0xf] %v863
        %878 = vst [vmem:[#allocation3 + $0x15c] sm:$0xf] %v864
        %879 = vst [vmem:[#allocation3 + $0x180] sm:$0xf] %v865
        %880 = vst [vmem:[#allocation3 + $0x1a4] sm:$0xf] %v866
        %881 = vst [vmem:[#allocation3 + $0x1c8] sm:$0xf] %v867
        %882 = vst [vmem:[#allocation3 + $0x1ec] sm:$0xf] %v868
        %v883 = vld [vmem:[#allocation2 + $0x28] sm:$0xff]
        %v884 = vld [vmem:[#allocation2 + $0x30] sm:$0xff]
        %v885 = vld [vmem:[#allocation2 + $0x38] sm:$0xff]
        %v886 = vld [vmem:[#allocation2 + $0x40] sm:$0xff]
        %v887 = vld [vmem:[#allocation2 + $0x48] sm:$0xff]
        %v888 = vld [vmem:[#allocation2 + $0x50] sm:$0xff]
        %v889 = vld [vmem:[#allocation2 + $0x58] sm:$0xff]
        %v890 = vld [vmem:[#allocation2 + $0x60] sm:$0xff]
        %v891 = vld [vmem:[#allocation2 + $0x68] sm:$0xff]
        %v892 = vld [vmem:[#allocation2 + $0x70] sm:$0xff]
        %v893 = vld [vmem:[#allocation2 + $0x78] sm:$0xff]
        %v894 = vld [vmem:[#allocation2 + $0x80] sm:$0xff]
        %v895 = vld [vmem:[#allocation2 + $0x88] sm:$0xff]
        %v896 = vld [vmem:[#allocation2 + $0x90] sm:$0xff]
        %v897 = vpack.c.bf16 %v883, %v883
        %v898 = vpack.c.bf16 %v884, %v884
        %v899 = vpack.c.bf16 %v885, %v885
        %v900 = vpack.c.bf16 %v886, %v886
        %v901 = vpack.c.bf16 %v887, %v887
        %v902 = vpack.c.bf16 %v888, %v888
        %v903 = vpack.c.bf16 %v889, %v889
        %v904 = vpack.c.bf16 %v890, %v890
        %v905 = vpack.c.bf16 %v891, %v891
        %v906 = vpack.c.bf16 %v892, %v892
        %v907 = vpack.c.bf16 %v893, %v893
        %v908 = vpack.c.bf16 %v894, %v894
        %v909 = vpack.c.bf16 %v895, %v895
        %v910 = vpack.c.bf16 %v896, %v896
        %911 = vst [vmem:[#allocation3 + $0x1c] sm:$0xf] %v897
        %912 = vst [vmem:[#allocation3 + $0x40] sm:$0xf] %v898
        %913 = vst [vmem:[#allocation3 + $0x64] sm:$0xf] %v899
        %914 = vst [vmem:[#allocation3 + $0x88] sm:$0xf] %v900
        %915 = vst [vmem:[#allocation3 + $0xac] sm:$0xf] %v901
        %916 = vst [vmem:[#allocation3 + $0xd0] sm:$0xf] %v902
        %917 = vst [vmem:[#allocation3 + $0xf4] sm:$0xf] %v903
        %918 = vst [vmem:[#allocation3 + $0x118] sm:$0xf] %v904
        %919 = vst [vmem:[#allocation3 + $0x13c] sm:$0xf] %v905
        %920 = vst [vmem:[#allocation3 + $0x160] sm:$0xf] %v906
        %921 = vst [vmem:[#allocation3 + $0x184] sm:$0xf] %v907
        %922 = vst [vmem:[#allocation3 + $0x1a8] sm:$0xf] %v908
        %923 = vst [vmem:[#allocation3 + $0x1cc] sm:$0xf] %v909
        %924 = vst [vmem:[#allocation3 + $0x1f0] sm:$0xf] %v910
        %v925 = vld [vmem:[#allocation2 + $0x29] sm:$0xff]
        %v926 = vld [vmem:[#allocation2 + $0x31] sm:$0xff]
        %v927 = vld [vmem:[#allocation2 + $0x39] sm:$0xff]
        %v928 = vld [vmem:[#allocation2 + $0x41] sm:$0xff]
        %v929 = vld [vmem:[#allocation2 + $0x49] sm:$0xff]
        %v930 = vld [vmem:[#allocation2 + $0x51] sm:$0xff]
        %v931 = vld [vmem:[#allocation2 + $0x59] sm:$0xff]
        %v932 = vld [vmem:[#allocation2 + $0x61] sm:$0xff]
        %v933 = vld [vmem:[#allocation2 + $0x69] sm:$0xff]
        %v934 = vld [vmem:[#allocation2 + $0x71] sm:$0xff]
        %v935 = vld [vmem:[#allocation2 + $0x79] sm:$0xff]
        %v936 = vld [vmem:[#allocation2 + $0x81] sm:$0xff]
        %v937 = vld [vmem:[#allocation2 + $0x89] sm:$0xff]
        %v938 = vld [vmem:[#allocation2 + $0x91] sm:$0xff]
        %v939 = vpack.c.bf16 %v925, %v925
        %v940 = vpack.c.bf16 %v926, %v926
        %v941 = vpack.c.bf16 %v927, %v927
        %v942 = vpack.c.bf16 %v928, %v928
        %v943 = vpack.c.bf16 %v929, %v929
        %v944 = vpack.c.bf16 %v930, %v930
        %v945 = vpack.c.bf16 %v931, %v931
        %v946 = vpack.c.bf16 %v932, %v932
        %v947 = vpack.c.bf16 %v933, %v933
        %v948 = vpack.c.bf16 %v934, %v934
        %v949 = vpack.c.bf16 %v935, %v935
        %v950 = vpack.c.bf16 %v936, %v936
        %v951 = vpack.c.bf16 %v937, %v937
        %v952 = vpack.c.bf16 %v938, %v938
        %953 = vst [vmem:[#allocation3 + $0x20] sm:$0xf] %v939
        %954 = vst [vmem:[#allocation3 + $0x44] sm:$0xf] %v940
        %955 = vst [vmem:[#allocation3 + $0x68] sm:$0xf] %v941
        %956 = vst [vmem:[#allocation3 + $0x8c] sm:$0xf] %v942
        %957 = vst [vmem:[#allocation3 + $0xb0] sm:$0xf] %v943
        %958 = vst [vmem:[#allocation3 + $0xd4] sm:$0xf] %v944
        %959 = vst [vmem:[#allocation3 + $0xf8] sm:$0xf] %v945
        %960 = vst [vmem:[#allocation3 + $0x11c] sm:$0xf] %v946
        %961 = vst [vmem:[#allocation3 + $0x140] sm:$0xf] %v947
        %962 = vst [vmem:[#allocation3 + $0x164] sm:$0xf] %v948
        %963 = vst [vmem:[#allocation3 + $0x188] sm:$0xf] %v949
        %964 = vst [vmem:[#allocation3 + $0x1ac] sm:$0xf] %v950
        %965 = vst [vmem:[#allocation3 + $0x1d0] sm:$0xf] %v951
        %966 = vst [vmem:[#allocation3 + $0x1f4] sm:$0xf] %v952
        %v967 = vld [vmem:[#allocation3] sm:$0xff]
        %v968 = vld [vmem:[#allocation3 + $0x8] sm:$0xff]
        %v969 = vld [vmem:[#allocation3 + $0x10] sm:$0xff]
        %v970 = vld [vmem:[#allocation3 + $0x18] sm:$0xff]
        %v971 = vld [vmem:[#allocation3 + $0x20] sm:$0xf]
        %v972 = vld [vmem:[#allocation3 + $0x24] sm:$0xff]
        %v973 = vld [vmem:[#allocation3 + $0x2c] sm:$0xff]
        %v974 = vld [vmem:[#allocation3 + $0x34] sm:$0xff]
        %v975 = vld [vmem:[#allocation3 + $0x3c] sm:$0xff]
        %v976 = vld [vmem:[#allocation3 + $0x44] sm:$0xf]
        %v977 = vld [vmem:[#allocation3 + $0x48] sm:$0xff]
        %v978 = vld [vmem:[#allocation3 + $0x50] sm:$0xff]
        %v979 = vld [vmem:[#allocation3 + $0x58] sm:$0xff]
        %v980 = vld [vmem:[#allocation3 + $0x60] sm:$0xff]
        %v981 = vld [vmem:[#allocation3 + $0x68] sm:$0xf]
        %v982 = vld [vmem:[#allocation3 + $0x6c] sm:$0xff]
        %v983 = vld [vmem:[#allocation3 + $0x74] sm:$0xff]
        %v984 = vld [vmem:[#allocation3 + $0x7c] sm:$0xff]
        %v985 = vld [vmem:[#allocation3 + $0x84] sm:$0xff]
        %v986 = vld [vmem:[#allocation3 + $0x8c] sm:$0xf]
        %v987 = vld [vmem:[#allocation3 + $0x90] sm:$0xff]
        %v988 = vld [vmem:[#allocation3 + $0x98] sm:$0xff]
        %v989 = vld [vmem:[#allocation3 + $0xa0] sm:$0xff]
        %v990 = vld [vmem:[#allocation3 + $0xa8] sm:$0xff]
        %v991 = vld [vmem:[#allocation3 + $0xb0] sm:$0xf]
        %v992 = vld [vmem:[#allocation3 + $0xb4] sm:$0xff]
        %v993 = vld [vmem:[#allocation3 + $0xbc] sm:$0xff]
        %v994 = vld [vmem:[#allocation3 + $0xc4] sm:$0xff]
        %v995 = vld [vmem:[#allocation3 + $0xcc] sm:$0xff]
        %v996 = vld [vmem:[#allocation3 + $0xd4] sm:$0xf]
        %v997 = vld [vmem:[#allocation3 + $0xd8] sm:$0xff]
        %v998 = vld [vmem:[#allocation3 + $0xe0] sm:$0xff]
        %v999 = vld [vmem:[#allocation3 + $0xe8] sm:$0xff]
        %v1000 = vld [vmem:[#allocation3 + $0xf0] sm:$0xff]
        %v1001 = vld [vmem:[#allocation3 + $0xf8] sm:$0xf]
        %v1002 = vld [vmem:[#allocation3 + $0xfc] sm:$0xff]
        %v1003 = vld [vmem:[#allocation3 + $0x104] sm:$0xff]
        %v1004 = vld [vmem:[#allocation3 + $0x10c] sm:$0xff]
        %v1005 = vld [vmem:[#allocation3 + $0x114] sm:$0xff]
        %v1006 = vld [vmem:[#allocation3 + $0x11c] sm:$0xf]
        %v1007 = vld [vmem:[#allocation3 + $0x120] sm:$0xff]
        %v1008 = vld [vmem:[#allocation3 + $0x128] sm:$0xff]
        %v1009 = vld [vmem:[#allocation3 + $0x130] sm:$0xff]
        %v1010 = vld [vmem:[#allocation3 + $0x138] sm:$0xff]
        %v1011 = vld [vmem:[#allocation3 + $0x140] sm:$0xf]
        %v1012 = vld [vmem:[#allocation3 + $0x144] sm:$0xff]
        %v1013 = vld [vmem:[#allocation3 + $0x14c] sm:$0xff]
        %v1014 = vld [vmem:[#allocation3 + $0x154] sm:$0xff]
        %v1015 = vld [vmem:[#allocation3 + $0x15c] sm:$0xff]
        %v1016 = vld [vmem:[#allocation3 + $0x164] sm:$0xf]
        %v1017 = vld [vmem:[#allocation3 + $0x168] sm:$0xff]
        %v1018 = vld [vmem:[#allocation3 + $0x170] sm:$0xff]
        %v1019 = vld [vmem:[#allocation3 + $0x178] sm:$0xff]
        %v1020 = vld [vmem:[#allocation3 + $0x180] sm:$0xff]
        %v1021 = vld [vmem:[#allocation3 + $0x188] sm:$0xf]
        %v1022 = vld [vmem:[#allocation3 + $0x18c] sm:$0xff]
        %v1023 = vld [vmem:[#allocation3 + $0x194] sm:$0xff]
        %v1024 = vld [vmem:[#allocation3 + $0x19c] sm:$0xff]
        %v1025 = vld [vmem:[#allocation3 + $0x1a4] sm:$0xff]
        %v1026 = vld [vmem:[#allocation3 + $0x1ac] sm:$0xf]
        %v1027 = vld [vmem:[#allocation3 + $0x1b0] sm:$0xff]
        %v1028 = vld [vmem:[#allocation3 + $0x1b8] sm:$0xff]
        %v1029 = vld [vmem:[#allocation3 + $0x1c0] sm:$0xff]
        %v1030 = vld [vmem:[#allocation3 + $0x1c8] sm:$0xff]
        %v1031 = vld [vmem:[#allocation3 + $0x1d0] sm:$0xf]
        %v1032 = vld [vmem:[#allocation3 + $0x1d4] sm:$0xff]
        %v1033 = vld [vmem:[#allocation3 + $0x1dc] sm:$0xff]
        %v1034 = vld [vmem:[#allocation3 + $0x1e4] sm:$0xff]
        %v1035 = vld [vmem:[#allocation3 + $0x1ec] sm:$0xff]
        %v1036 = vld [vmem:[#allocation3 + $0x1f4] sm:$0xf]
        %v1037 = vld [vmem:[%s4] sm:$0xf]
        %v1038 = vld [vmem:[%s4 + $0x4] sm:$0xf]
        %v1039 = vld [vmem:[%s4 + $0x8] sm:$0xf]
        %v1040 = vld [vmem:[%s4 + $0xc] sm:$0xf]
        %v1041 = vld [vmem:[%s4 + $0x10] sm:$0xf]
        %v1042 = vld [vmem:[%s4 + $0x14] sm:$0xf]
        %v1043 = vld [vmem:[%s4 + $0x18] sm:$0xf]
        %v1044 = vld [vmem:[%s4 + $0x1c] sm:$0xf]
        %v1045 = vld [vmem:[%s4 + $0x20] sm:$0xf]
        %v1046 = vld [vmem:[%s4 + $0x24] sm:$0xf]
        %v1047 = vld [vmem:[%s4 + $0x28] sm:$0xf]
        %v1048 = vld [vmem:[%s4 + $0x2c] sm:$0xf]
        %v1049 = vld [vmem:[%s4 + $0x30] sm:$0xf]
        %v1050 = vld [vmem:[%s4 + $0x34] sm:$0xf]
        %v1051 = vld [vmem:[%s4 + $0x38] sm:$0xf]
        %v1052 = vld [vmem:[%s4 + $0x3c] sm:$0xf]
        %v1053 = vld [vmem:[%s4 + $0x40] sm:$0xf]
        %v1054 = vld [vmem:[%s4 + $0x44] sm:$0xf]
        %v1055 = vld [vmem:[%s4 + $0x48] sm:$0xf]
        %v1056 = vld [vmem:[%s4 + $0x4c] sm:$0xf]
        %v1057 = vld [vmem:[%s4 + $0x50] sm:$0xf]
        %v1058 = vld [vmem:[%s4 + $0x54] sm:$0xf]
        %v1059 = vld [vmem:[%s4 + $0x58] sm:$0xf]
        %v1060 = vld [vmem:[%s4 + $0x5c] sm:$0xf]
        %v1061 = vld [vmem:[%s4 + $0x60] sm:$0xf]
        %v1062 = vld [vmem:[%s4 + $0x64] sm:$0xf]
        %v1063 = vld [vmem:[%s4 + $0x68] sm:$0xf]
        %v1064 = vld [vmem:[%s4 + $0x6c] sm:$0xf]
        %v1065 = vld [vmem:[%s4 + $0x70] sm:$0xf]
        %v1066 = vld [vmem:[%s4 + $0x74] sm:$0xf]
        %v1067 = vld [vmem:[%s4 + $0x78] sm:$0xf]
        %v1068 = vld [vmem:[%s4 + $0x7c] sm:$0xf]
        %v1069 = vld [vmem:[%s4 + $0x80] sm:$0xf]
        %v1070 = vld [vmem:[%s4 + $0x84] sm:$0xf]
        %v1071 = vld [vmem:[%s4 + $0x88] sm:$0xf]
        %v1072 = vld [vmem:[%s4 + $0x8c] sm:$0xf]
        %v1073 = vld [vmem:[%s4 + $0x90] sm:$0xf]
        %v1074 = vld [vmem:[%s4 + $0x94] sm:$0xf]
        %v1075 = vld [vmem:[%s4 + $0x98] sm:$0xf]
        %v1076 = vld [vmem:[%s4 + $0x9c] sm:$0xf]
        %v1077 = vld [vmem:[%s4 + $0xa0] sm:$0xf]
        %v1078 = vld [vmem:[%s4 + $0xa4] sm:$0xf]
        %v1079 = vld [vmem:[%s4 + $0xa8] sm:$0xf]
        %v1080 = vld [vmem:[%s4 + $0xac] sm:$0xf]
        %v1081 = vld [vmem:[%s4 + $0xb0] sm:$0xf]
        %v1082 = vld [vmem:[%s4 + $0xb4] sm:$0xf]
        %v1083 = vld [vmem:[%s4 + $0xb8] sm:$0xf]
        %v1084 = vld [vmem:[%s4 + $0xbc] sm:$0xf]
        %v1085 = vld [vmem:[%s4 + $0xc0] sm:$0xf]
        %v1086 = vld [vmem:[%s4 + $0xc4] sm:$0xf]
        %v1087 = vld [vmem:[%s4 + $0xc8] sm:$0xf]
        %v1088 = vld [vmem:[%s4 + $0xcc] sm:$0xf]
        %v1089 = vld [vmem:[%s4 + $0xd0] sm:$0xf]
        %v1090 = vld [vmem:[%s4 + $0xd4] sm:$0xf]
        %v1091 = vld [vmem:[%s4 + $0xd8] sm:$0xf]
        %v1092 = vld [vmem:[%s4 + $0xdc] sm:$0xf]
        %v1093 = vld [vmem:[%s4 + $0xe0] sm:$0xf]
        %v1094 = vld [vmem:[%s4 + $0xe4] sm:$0xf]
        %v1095 = vld [vmem:[%s4 + $0xe8] sm:$0xf]
        %v1096 = vld [vmem:[%s4 + $0xec] sm:$0xf]
        %v1097 = vld [vmem:[%s4 + $0xf0] sm:$0xf]
        %v1098 = vld [vmem:[%s4 + $0xf4] sm:$0xf]
        %v1099 = vld [vmem:[%s4 + $0xf8] sm:$0xf]
        %v1100 = vld [vmem:[%s4 + $0xfc] sm:$0xf]
        %v1101 = vld [vmem:[%s4 + $0x100] sm:$0xf]
        %v1102 = vld [vmem:[%s4 + $0x104] sm:$0xf]
        %v1103 = vld [vmem:[%s4 + $0x108] sm:$0xf]
        %v1104 = vld [vmem:[%s4 + $0x10c] sm:$0xf]
        %v1105 = vld [vmem:[%s4 + $0x110] sm:$0xf]
        %v1106 = vld [vmem:[%s4 + $0x114] sm:$0xf]
        %v1107 = vld [vmem:[%s4 + $0x118] sm:$0xf]
        %v1108 = vld [vmem:[%s4 + $0x11c] sm:$0xf]
        %v1109 = vld [vmem:[%s4 + $0x120] sm:$0xf]
        %v1110 = vld [vmem:[%s4 + $0x124] sm:$0xf]
        %v1111 = vld [vmem:[%s4 + $0x128] sm:$0xf]
        %v1112 = vld [vmem:[%s4 + $0x12c] sm:$0xf]
        %v1113 = vld [vmem:[%s4 + $0x130] sm:$0xf]
        %v1114 = vld [vmem:[%s4 + $0x134] sm:$0xf]
        %v1115 = vld [vmem:[%s4 + $0x138] sm:$0xf]
        %v1116 = vld [vmem:[%s4 + $0x13c] sm:$0xf]
        %v1117 = vld [vmem:[%s4 + $0x140] sm:$0xf]
        %v1118 = vld [vmem:[%s4 + $0x144] sm:$0xf]
        %v1119 = vld [vmem:[%s4 + $0x148] sm:$0xf]
        %v1120 = vld [vmem:[%s4 + $0x14c] sm:$0xf]
        %v1121 = vld [vmem:[%s4 + $0x150] sm:$0xf]
        %v1122 = vld [vmem:[%s4 + $0x154] sm:$0xf]
        %v1123 = vld [vmem:[%s4 + $0x158] sm:$0xf]
        %v1124 = vld [vmem:[%s4 + $0x15c] sm:$0xf]
        %v1125 = vld [vmem:[%s4 + $0x160] sm:$0xf]
        %v1126 = vld [vmem:[%s4 + $0x164] sm:$0xf]
        %v1127 = vld [vmem:[%s4 + $0x168] sm:$0xf]
        %v1128 = vld [vmem:[%s4 + $0x16c] sm:$0xf]
        %v1129 = vld [vmem:[%s4 + $0x170] sm:$0xf]
        %v1130 = vld [vmem:[%s4 + $0x174] sm:$0xf]
        %v1131 = vld [vmem:[%s4 + $0x178] sm:$0xf]
        %v1132 = vld [vmem:[%s4 + $0x17c] sm:$0xf]
        %v1133 = vld [vmem:[%s4 + $0x180] sm:$0xf]
        %v1134 = vld [vmem:[%s4 + $0x184] sm:$0xf]
        %v1135 = vld [vmem:[%s4 + $0x188] sm:$0xf]
        %v1136 = vld [vmem:[%s4 + $0x18c] sm:$0xf]
        %v1137 = vld [vmem:[%s4 + $0x190] sm:$0xf]
        %v1138 = vld [vmem:[%s4 + $0x194] sm:$0xf]
        %v1139 = vld [vmem:[%s4 + $0x198] sm:$0xf]
        %v1140 = vld [vmem:[%s4 + $0x19c] sm:$0xf]
        %v1141 = vld [vmem:[%s4 + $0x1a0] sm:$0xf]
        %v1142 = vld [vmem:[%s4 + $0x1a4] sm:$0xf]
        %v1143 = vld [vmem:[%s4 + $0x1a8] sm:$0xf]
        %v1144 = vld [vmem:[%s4 + $0x1ac] sm:$0xf]
        %v1145 = vld [vmem:[%s4 + $0x1b0] sm:$0xf]
        %v1146 = vld [vmem:[%s4 + $0x1b4] sm:$0xf]
        %v1147 = vld [vmem:[%s4 + $0x1b8] sm:$0xf]
        %v1148 = vld [vmem:[%s4 + $0x1bc] sm:$0xf]
        %v1149 = vld [vmem:[%s4 + $0x1c0] sm:$0xf]
        %v1150 = vld [vmem:[%s4 + $0x1c4] sm:$0xf]
        %v1151 = vld [vmem:[%s4 + $0x1c8] sm:$0xf]
        %v1152 = vld [vmem:[%s4 + $0x1cc] sm:$0xf]
        %v1153 = vld [vmem:[%s4 + $0x1d0] sm:$0xf]
        %v1154 = vld [vmem:[%s4 + $0x1d4] sm:$0xf]
        %v1155 = vld [vmem:[%s4 + $0x1d8] sm:$0xf]
        %v1156 = vld [vmem:[%s4 + $0x1dc] sm:$0xf]
        %v1157 = vld [vmem:[%s4 + $0x1e0] sm:$0xf]
        %v1158 = vld [vmem:[%s4 + $0x1e4] sm:$0xf]
        %v1159 = vld [vmem:[%s4 + $0x1e8] sm:$0xf]
        %v1160 = vld [vmem:[%s4 + $0x1ec] sm:$0xf]
        %v1161 = vld [vmem:[%s4 + $0x1f0] sm:$0xf]
        %v1162 = vld [vmem:[%s4 + $0x1f4] sm:$0xf]
        %v1163 = vld [vmem:[%s4 + $0x1f8] sm:$0xf]
        %v1164 = vld [vmem:[%s4 + $0x1fc] sm:$0xf]
        %v1165 = vld [vmem:[%s4 + $0x200] sm:$0xf]
        %v1166 = vld [vmem:[%s4 + $0x204] sm:$0xf]
        %v1167 = vld [vmem:[%s4 + $0x208] sm:$0xf]
        %v1168 = vld [vmem:[%s4 + $0x20c] sm:$0xf]
        %v1169 = vld [vmem:[%s4 + $0x210] sm:$0xf]
        %v1170 = vld [vmem:[%s4 + $0x214] sm:$0xf]
        %v1171 = vld [vmem:[%s4 + $0x218] sm:$0xf]
        %v1172 = vld [vmem:[%s4 + $0x21c] sm:$0xf]
        %v1173 = vld [vmem:[%s4 + $0x220] sm:$0xf]
        %v1174 = vld [vmem:[%s4 + $0x224] sm:$0xf]
        %v1175 = vld [vmem:[%s4 + $0x228] sm:$0xf]
        %v1176 = vld [vmem:[%s4 + $0x22c] sm:$0xf]
        %v1177 = vld [vmem:[%s4 + $0x230] sm:$0xf]
        %v1178 = vld [vmem:[%s4 + $0x234] sm:$0xf]
        %v1179 = vld [vmem:[%s4 + $0x238] sm:$0xf]
        %v1180 = vld [vmem:[%s4 + $0x23c] sm:$0xf]
        %v1181 = vld [vmem:[%s5] sm:$0x1]
        %v1183 = vperm.slane %v1181, 0
        %v1255 = vunpack.c.l.b16 %v967
        %v1256 = vunpack.c.h.b16 %v967
        %v1257 = vunpack.c.l.b16 %v968
        %v1258 = vunpack.c.h.b16 %v968
        %v1259 = vunpack.c.l.b16 %v969
        %v1260 = vunpack.c.h.b16 %v969
        %v1261 = vunpack.c.l.b16 %v970
        %v1262 = vunpack.c.h.b16 %v970
        %v1263 = vunpack.c.l.b16 %v971
        %v1264 = vunpack.c.l.b16 %v972
        %v1265 = vunpack.c.h.b16 %v972
        %v1266 = vunpack.c.l.b16 %v973
        %v1267 = vunpack.c.h.b16 %v973
        %v1268 = vunpack.c.l.b16 %v974
        %v1269 = vunpack.c.h.b16 %v974
        %v1270 = vunpack.c.l.b16 %v975
        %v1271 = vunpack.c.h.b16 %v975
        %v1272 = vunpack.c.l.b16 %v976
        %v1273 = vunpack.c.l.b16 %v977
        %v1274 = vunpack.c.h.b16 %v977
        %v1275 = vunpack.c.l.b16 %v978
        %v1276 = vunpack.c.h.b16 %v978
        %v1277 = vunpack.c.l.b16 %v979
        %v1278 = vunpack.c.h.b16 %v979
        %v1279 = vunpack.c.l.b16 %v980
        %v1280 = vunpack.c.h.b16 %v980
        %v1281 = vunpack.c.l.b16 %v981
        %v1282 = vunpack.c.l.b16 %v982
        %v1283 = vunpack.c.h.b16 %v982
        %v1284 = vunpack.c.l.b16 %v983
        %v1285 = vunpack.c.h.b16 %v983
        %v1286 = vunpack.c.l.b16 %v984
        %v1287 = vunpack.c.h.b16 %v984
        %v1288 = vunpack.c.l.b16 %v985
        %v1289 = vunpack.c.h.b16 %v985
        %v1290 = vunpack.c.l.b16 %v986
        %v1291 = vunpack.c.l.b16 %v987
        %v1292 = vunpack.c.h.b16 %v987
        %v1293 = vunpack.c.l.b16 %v988
        %v1294 = vunpack.c.h.b16 %v988
        %v1295 = vunpack.c.l.b16 %v989
        %v1296 = vunpack.c.h.b16 %v989
        %v1297 = vunpack.c.l.b16 %v990
        %v1298 = vunpack.c.h.b16 %v990
        %v1299 = vunpack.c.l.b16 %v991
        %v1300 = vunpack.c.l.b16 %v992
        %v1301 = vunpack.c.h.b16 %v992
        %v1302 = vunpack.c.l.b16 %v993
        %v1303 = vunpack.c.h.b16 %v993
        %v1304 = vunpack.c.l.b16 %v994
        %v1305 = vunpack.c.h.b16 %v994
        %v1306 = vunpack.c.l.b16 %v995
        %v1307 = vunpack.c.h.b16 %v995
        %v1308 = vunpack.c.l.b16 %v996
        %v1309 = vunpack.c.l.b16 %v997
        %v1310 = vunpack.c.h.b16 %v997
        %v1311 = vunpack.c.l.b16 %v998
        %v1312 = vunpack.c.h.b16 %v998
        %v1313 = vunpack.c.l.b16 %v999
        %v1314 = vunpack.c.h.b16 %v999
        %v1315 = vunpack.c.l.b16 %v1000
        %v1316 = vunpack.c.h.b16 %v1000
        %v1317 = vunpack.c.l.b16 %v1001
        %v1318 = vunpack.c.l.b16 %v1002
        %v1319 = vunpack.c.h.b16 %v1002
        %v1320 = vunpack.c.l.b16 %v1003
        %v1321 = vunpack.c.h.b16 %v1003
        %v1322 = vunpack.c.l.b16 %v1004
        %v1323 = vunpack.c.h.b16 %v1004
        %v1324 = vunpack.c.l.b16 %v1005
        %v1325 = vunpack.c.h.b16 %v1005
        %v1326 = vunpack.c.l.b16 %v1006
        %v1327 = vunpack.c.l.b16 %v1007
        %v1328 = vunpack.c.h.b16 %v1007
        %v1329 = vunpack.c.l.b16 %v1008
        %v1330 = vunpack.c.h.b16 %v1008
        %v1331 = vunpack.c.l.b16 %v1009
        %v1332 = vunpack.c.h.b16 %v1009
        %v1333 = vunpack.c.l.b16 %v1010
        %v1334 = vunpack.c.h.b16 %v1010
        %v1335 = vunpack.c.l.b16 %v1011
        %v1336 = vunpack.c.l.b16 %v1012
        %v1337 = vunpack.c.h.b16 %v1012
        %v1338 = vunpack.c.l.b16 %v1013
        %v1339 = vunpack.c.h.b16 %v1013
        %v1340 = vunpack.c.l.b16 %v1014
        %v1341 = vunpack.c.h.b16 %v1014
        %v1342 = vunpack.c.l.b16 %v1015
        %v1343 = vunpack.c.h.b16 %v1015
        %v1344 = vunpack.c.l.b16 %v1016
        %v1345 = vunpack.c.l.b16 %v1017
        %v1346 = vunpack.c.h.b16 %v1017
        %v1347 = vunpack.c.l.b16 %v1018
        %v1348 = vunpack.c.h.b16 %v1018
        %v1349 = vunpack.c.l.b16 %v1019
        %v1350 = vunpack.c.h.b16 %v1019
        %v1351 = vunpack.c.l.b16 %v1020
        %v1352 = vunpack.c.h.b16 %v1020
        %v1353 = vunpack.c.l.b16 %v1021
        %v1354 = vunpack.c.l.b16 %v1022
        %v1355 = vunpack.c.h.b16 %v1022
        %v1356 = vunpack.c.l.b16 %v1023
        %v1357 = vunpack.c.h.b16 %v1023
        %v1358 = vunpack.c.l.b16 %v1024
        %v1359 = vunpack.c.h.b16 %v1024
        %v1360 = vunpack.c.l.b16 %v1025
        %v1361 = vunpack.c.h.b16 %v1025
        %v1362 = vunpack.c.l.b16 %v1026
        %v1363 = vunpack.c.l.b16 %v1027
        %v1364 = vunpack.c.h.b16 %v1027
        %v1365 = vunpack.c.l.b16 %v1028
        %v1366 = vunpack.c.h.b16 %v1028
        %v1367 = vunpack.c.l.b16 %v1029
        %v1368 = vunpack.c.h.b16 %v1029
        %v1369 = vunpack.c.l.b16 %v1030
        %v1370 = vunpack.c.h.b16 %v1030
        %v1371 = vunpack.c.l.b16 %v1031
        %v1372 = vunpack.c.l.b16 %v1032
        %v1373 = vunpack.c.h.b16 %v1032
        %v1374 = vunpack.c.l.b16 %v1033
        %v1375 = vunpack.c.h.b16 %v1033
        %v1376 = vunpack.c.l.b16 %v1034
        %v1377 = vunpack.c.h.b16 %v1034
        %v1378 = vunpack.c.l.b16 %v1035
        %v1379 = vunpack.c.h.b16 %v1035
        %v1380 = vunpack.c.l.b16 %v1036
        %v1381 = vpack.c.b16 %v1264, %v1255
        %v1382 = vpack.c.b16 %v1265, %v1256
        %v1383 = vpack.c.b16 %v1266, %v1257
        %v1384 = vpack.c.b16 %v1267, %v1258
        %v1385 = vpack.c.b16 %v1268, %v1259
        %v1386 = vpack.c.b16 %v1269, %v1260
        %v1387 = vpack.c.b16 %v1270, %v1261
        %v1388 = vpack.c.b16 %v1271, %v1262
        %v1389 = vpack.c.b16 %v1272, %v1263
        %v1390 = vpack.c.b16 %v1282, %v1273
        %v1391 = vpack.c.b16 %v1283, %v1274
        %v1392 = vpack.c.b16 %v1284, %v1275
        %v1393 = vpack.c.b16 %v1285, %v1276
        %v1394 = vpack.c.b16 %v1286, %v1277
        %v1395 = vpack.c.b16 %v1287, %v1278
        %v1396 = vpack.c.b16 %v1288, %v1279
        %v1397 = vpack.c.b16 %v1289, %v1280
        %v1398 = vpack.c.b16 %v1290, %v1281
        %v1399 = vpack.c.b16 %v1300, %v1291
        %v1400 = vpack.c.b16 %v1301, %v1292
        %v1401 = vpack.c.b16 %v1302, %v1293
        %v1402 = vpack.c.b16 %v1303, %v1294
        %v1403 = vpack.c.b16 %v1304, %v1295
        %v1404 = vpack.c.b16 %v1305, %v1296
        %v1405 = vpack.c.b16 %v1306, %v1297
        %v1406 = vpack.c.b16 %v1307, %v1298
        %v1407 = vpack.c.b16 %v1308, %v1299
        %v1408 = vpack.c.b16 %v1318, %v1309
        %v1409 = vpack.c.b16 %v1319, %v1310
        %v1410 = vpack.c.b16 %v1320, %v1311
        %v1411 = vpack.c.b16 %v1321, %v1312
        %v1412 = vpack.c.b16 %v1322, %v1313
        %v1413 = vpack.c.b16 %v1323, %v1314
        %v1414 = vpack.c.b16 %v1324, %v1315
        %v1415 = vpack.c.b16 %v1325, %v1316
        %v1416 = vpack.c.b16 %v1326, %v1317
        %v1417 = vpack.c.b16 %v1336, %v1327
        %v1418 = vpack.c.b16 %v1337, %v1328
        %v1419 = vpack.c.b16 %v1338, %v1329
        %v1420 = vpack.c.b16 %v1339, %v1330
        %v1421 = vpack.c.b16 %v1340, %v1331
        %v1422 = vpack.c.b16 %v1341, %v1332
        %v1423 = vpack.c.b16 %v1342, %v1333
        %v1424 = vpack.c.b16 %v1343, %v1334
        %v1425 = vpack.c.b16 %v1344, %v1335
        %v1426 = vpack.c.b16 %v1354, %v1345
        %v1427 = vpack.c.b16 %v1355, %v1346
        %v1428 = vpack.c.b16 %v1356, %v1347
        %v1429 = vpack.c.b16 %v1357, %v1348
        %v1430 = vpack.c.b16 %v1358, %v1349
        %v1431 = vpack.c.b16 %v1359, %v1350
        %v1432 = vpack.c.b16 %v1360, %v1351
        %v1433 = vpack.c.b16 %v1361, %v1352
        %v1434 = vpack.c.b16 %v1362, %v1353
        %v1435 = vpack.c.b16 %v1372, %v1363
        %v1436 = vpack.c.b16 %v1373, %v1364
        %v1437 = vpack.c.b16 %v1374, %v1365
        %v1438 = vpack.c.b16 %v1375, %v1366
        %v1439 = vpack.c.b16 %v1376, %v1367
        %v1440 = vpack.c.b16 %v1377, %v1368
        %v1441 = vpack.c.b16 %v1378, %v1369
        %v1442 = vpack.c.b16 %v1379, %v1370
        %v1443 = vpack.c.b16 %v1380, %v1371
        %v1651 = vunpack.c.l.b16 %v1037
        %v1652 = vunpack.c.l.b16 %v1038
        %v1653 = vunpack.c.l.b16 %v1039
        %v1654 = vunpack.c.l.b16 %v1040
        %v1655 = vunpack.c.l.b16 %v1041
        %v1656 = vunpack.c.l.b16 %v1042
        %v1657 = vunpack.c.l.b16 %v1043
        %v1658 = vunpack.c.l.b16 %v1044
        %v1659 = vunpack.c.l.b16 %v1045
        %v1660 = vunpack.c.l.b16 %v1046
        %v1661 = vunpack.c.l.b16 %v1047
        %v1662 = vunpack.c.l.b16 %v1048
        %v1663 = vunpack.c.l.b16 %v1049
        %v1664 = vunpack.c.l.b16 %v1050
        %v1665 = vunpack.c.l.b16 %v1051
        %v1666 = vunpack.c.l.b16 %v1052
        %v1667 = vunpack.c.l.b16 %v1053
        %v1668 = vunpack.c.l.b16 %v1054
        %v1669 = vunpack.c.l.b16 %v1055
        %v1670 = vunpack.c.l.b16 %v1056
        %v1671 = vunpack.c.l.b16 %v1057
        %v1672 = vunpack.c.l.b16 %v1058
        %v1673 = vunpack.c.l.b16 %v1059
        %v1674 = vunpack.c.l.b16 %v1060
        %v1675 = vunpack.c.l.b16 %v1061
        %v1676 = vunpack.c.l.b16 %v1062
        %v1677 = vunpack.c.l.b16 %v1063
        %v1678 = vunpack.c.l.b16 %v1064
        %v1679 = vunpack.c.l.b16 %v1065
        %v1680 = vunpack.c.l.b16 %v1066
        %v1681 = vunpack.c.l.b16 %v1067
        %v1682 = vunpack.c.l.b16 %v1068
        %v1683 = vunpack.c.l.b16 %v1069
        %v1684 = vunpack.c.l.b16 %v1070
        %v1685 = vunpack.c.l.b16 %v1071
        %v1686 = vunpack.c.l.b16 %v1072
        %v1687 = vunpack.c.l.b16 %v1073
        %v1688 = vunpack.c.l.b16 %v1074
        %v1689 = vunpack.c.l.b16 %v1075
        %v1690 = vunpack.c.l.b16 %v1076
        %v1691 = vunpack.c.l.b16 %v1077
        %v1692 = vunpack.c.l.b16 %v1078
        %v1693 = vunpack.c.l.b16 %v1079
        %v1694 = vunpack.c.l.b16 %v1080
        %v1695 = vunpack.c.l.b16 %v1081
        %v1696 = vunpack.c.l.b16 %v1082
        %v1697 = vunpack.c.l.b16 %v1083
        %v1698 = vunpack.c.l.b16 %v1084
        %v1699 = vunpack.c.l.b16 %v1085
        %v1700 = vunpack.c.l.b16 %v1086
        %v1701 = vunpack.c.l.b16 %v1087
        %v1702 = vunpack.c.l.b16 %v1088
        %v1703 = vunpack.c.l.b16 %v1089
        %v1704 = vunpack.c.l.b16 %v1090
        %v1705 = vunpack.c.l.b16 %v1091
        %v1706 = vunpack.c.l.b16 %v1092
        %v1707 = vunpack.c.l.b16 %v1093
        %v1708 = vunpack.c.l.b16 %v1094
        %v1709 = vunpack.c.l.b16 %v1095
        %v1710 = vunpack.c.l.b16 %v1096
        %v1711 = vunpack.c.l.b16 %v1097
        %v1712 = vunpack.c.l.b16 %v1098
        %v1713 = vunpack.c.l.b16 %v1099
        %v1714 = vunpack.c.l.b16 %v1100
        %v1715 = vunpack.c.l.b16 %v1101
        %v1716 = vunpack.c.l.b16 %v1102
        %v1717 = vunpack.c.l.b16 %v1103
        %v1718 = vunpack.c.l.b16 %v1104
        %v1719 = vunpack.c.l.b16 %v1105
        %v1720 = vunpack.c.l.b16 %v1106
        %v1721 = vunpack.c.l.b16 %v1107
        %v1722 = vunpack.c.l.b16 %v1108
        %v1723 = vunpack.c.l.b16 %v1109
        %v1724 = vunpack.c.l.b16 %v1110
        %v1725 = vunpack.c.l.b16 %v1111
        %v1726 = vunpack.c.l.b16 %v1112
        %v1727 = vunpack.c.l.b16 %v1113
        %v1728 = vunpack.c.l.b16 %v1114
        %v1729 = vunpack.c.l.b16 %v1115
        %v1730 = vunpack.c.l.b16 %v1116
        %v1731 = vunpack.c.l.b16 %v1117
        %v1732 = vunpack.c.l.b16 %v1118
        %v1733 = vunpack.c.l.b16 %v1119
        %v1734 = vunpack.c.l.b16 %v1120
        %v1735 = vunpack.c.l.b16 %v1121
        %v1736 = vunpack.c.l.b16 %v1122
        %v1737 = vunpack.c.l.b16 %v1123
        %v1738 = vunpack.c.l.b16 %v1124
        %v1739 = vunpack.c.l.b16 %v1125
        %v1740 = vunpack.c.l.b16 %v1126
        %v1741 = vunpack.c.l.b16 %v1127
        %v1742 = vunpack.c.l.b16 %v1128
        %v1743 = vunpack.c.l.b16 %v1129
        %v1744 = vunpack.c.l.b16 %v1130
        %v1745 = vunpack.c.l.b16 %v1131
        %v1746 = vunpack.c.l.b16 %v1132
        %v1747 = vunpack.c.l.b16 %v1133
        %v1748 = vunpack.c.l.b16 %v1134
        %v1749 = vunpack.c.l.b16 %v1135
        %v1750 = vunpack.c.l.b16 %v1136
        %v1751 = vunpack.c.l.b16 %v1137
        %v1752 = vunpack.c.l.b16 %v1138
        %v1753 = vunpack.c.l.b16 %v1139
        %v1754 = vunpack.c.l.b16 %v1140
        %v1755 = vunpack.c.l.b16 %v1141
        %v1756 = vunpack.c.l.b16 %v1142
        %v1757 = vunpack.c.l.b16 %v1143
        %v1758 = vunpack.c.l.b16 %v1144
        %v1759 = vunpack.c.l.b16 %v1145
        %v1760 = vunpack.c.l.b16 %v1146
        %v1761 = vunpack.c.l.b16 %v1147
        %v1762 = vunpack.c.l.b16 %v1148
        %v1763 = vunpack.c.l.b16 %v1149
        %v1764 = vunpack.c.l.b16 %v1150
        %v1765 = vunpack.c.l.b16 %v1151
        %v1766 = vunpack.c.l.b16 %v1152
        %v1767 = vunpack.c.l.b16 %v1153
        %v1768 = vunpack.c.l.b16 %v1154
        %v1769 = vunpack.c.l.b16 %v1155
        %v1770 = vunpack.c.l.b16 %v1156
        %v1771 = vunpack.c.l.b16 %v1157
        %v1772 = vunpack.c.l.b16 %v1158
        %v1773 = vunpack.c.l.b16 %v1159
        %v1774 = vunpack.c.l.b16 %v1160
        %v1775 = vunpack.c.l.b16 %v1161
        %v1776 = vunpack.c.l.b16 %v1162
        %v1777 = vunpack.c.l.b16 %v1163
        %v1778 = vunpack.c.l.b16 %v1164
        %v1779 = vunpack.c.l.b16 %v1165
        %v1780 = vunpack.c.l.b16 %v1166
        %v1781 = vunpack.c.l.b16 %v1167
        %v1782 = vunpack.c.l.b16 %v1168
        %v1783 = vunpack.c.l.b16 %v1169
        %v1784 = vunpack.c.l.b16 %v1170
        %v1785 = vunpack.c.l.b16 %v1171
        %v1786 = vunpack.c.l.b16 %v1172
        %v1787 = vunpack.c.l.b16 %v1173
        %v1788 = vunpack.c.l.b16 %v1174
        %v1789 = vunpack.c.l.b16 %v1175
        %v1790 = vunpack.c.l.b16 %v1176
        %v1791 = vunpack.c.l.b16 %v1177
        %v1792 = vunpack.c.l.b16 %v1178
        %v1793 = vunpack.c.l.b16 %v1179
        %v1794 = vunpack.c.l.b16 %v1180
        %v1795 = vpack.c.b16 %v1652, %v1651
        %v1796 = vpack.c.b16 %v1654, %v1653
        %v1797 = vpack.c.b16 %v1656, %v1655
        %v1798 = vpack.c.b16 %v1658, %v1657
        %v1799 = vpack.c.b16 %v1660, %v1659
        %v1800 = vpack.c.b16 %v1662, %v1661
        %v1801 = vpack.c.b16 %v1664, %v1663
        %v1802 = vpack.c.b16 %v1666, %v1665
        %v1803 = vpack.c.b16 %v1668, %v1667
        %v1804 = vpack.c.b16 %v1670, %v1669
        %v1805 = vpack.c.b16 %v1672, %v1671
        %v1806 = vpack.c.b16 %v1674, %v1673
        %v1807 = vpack.c.b16 %v1676, %v1675
        %v1808 = vpack.c.b16 %v1678, %v1677
        %v1809 = vpack.c.b16 %v1680, %v1679
        %v1810 = vpack.c.b16 %v1682, %v1681
        %v1811 = vpack.c.b16 %v1684, %v1683
        %v1812 = vpack.c.b16 %v1686, %v1685
        %v1813 = vpack.c.b16 %v1688, %v1687
        %v1814 = vpack.c.b16 %v1690, %v1689
        %v1815 = vpack.c.b16 %v1692, %v1691
        %v1816 = vpack.c.b16 %v1694, %v1693
        %v1817 = vpack.c.b16 %v1696, %v1695
        %v1818 = vpack.c.b16 %v1698, %v1697
        %v1819 = vpack.c.b16 %v1700, %v1699
        %v1820 = vpack.c.b16 %v1702, %v1701
        %v1821 = vpack.c.b16 %v1704, %v1703
        %v1822 = vpack.c.b16 %v1706, %v1705
        %v1823 = vpack.c.b16 %v1708, %v1707
        %v1824 = vpack.c.b16 %v1710, %v1709
        %v1825 = vpack.c.b16 %v1712, %v1711
        %v1826 = vpack.c.b16 %v1714, %v1713
        %v1827 = vpack.c.b16 %v1716, %v1715
        %v1828 = vpack.c.b16 %v1718, %v1717
        %v1829 = vpack.c.b16 %v1720, %v1719
        %v1830 = vpack.c.b16 %v1722, %v1721
        %v1831 = vpack.c.b16 %v1724, %v1723
        %v1832 = vpack.c.b16 %v1726, %v1725
        %v1833 = vpack.c.b16 %v1728, %v1727
        %v1834 = vpack.c.b16 %v1730, %v1729
        %v1835 = vpack.c.b16 %v1732, %v1731
        %v1836 = vpack.c.b16 %v1734, %v1733
        %v1837 = vpack.c.b16 %v1736, %v1735
        %v1838 = vpack.c.b16 %v1738, %v1737
        %v1839 = vpack.c.b16 %v1740, %v1739
        %v1840 = vpack.c.b16 %v1742, %v1741
        %v1841 = vpack.c.b16 %v1744, %v1743
        %v1842 = vpack.c.b16 %v1746, %v1745
        %v1843 = vpack.c.b16 %v1748, %v1747
        %v1844 = vpack.c.b16 %v1750, %v1749
        %v1845 = vpack.c.b16 %v1752, %v1751
        %v1846 = vpack.c.b16 %v1754, %v1753
        %v1847 = vpack.c.b16 %v1756, %v1755
        %v1848 = vpack.c.b16 %v1758, %v1757
        %v1849 = vpack.c.b16 %v1760, %v1759
        %v1850 = vpack.c.b16 %v1762, %v1761
        %v1851 = vpack.c.b16 %v1764, %v1763
        %v1852 = vpack.c.b16 %v1766, %v1765
        %v1853 = vpack.c.b16 %v1768, %v1767
        %v1854 = vpack.c.b16 %v1770, %v1769
        %v1855 = vpack.c.b16 %v1772, %v1771
        %v1856 = vpack.c.b16 %v1774, %v1773
        %v1857 = vpack.c.b16 %v1776, %v1775
        %v1858 = vpack.c.b16 %v1778, %v1777
        %v1859 = vpack.c.b16 %v1780, %v1779
        %v1860 = vpack.c.b16 %v1782, %v1781
        %v1861 = vpack.c.b16 %v1784, %v1783
        %v1862 = vpack.c.b16 %v1786, %v1785
        %v1863 = vpack.c.b16 %v1788, %v1787
        %v1864 = vpack.c.b16 %v1790, %v1789
        %v1865 = vpack.c.b16 %v1792, %v1791
        %v1866 = vpack.c.b16 %v1794, %v1793
        %1939 = vmatpush.bf16.msra.mxu0 %v1802
        %1940 = vmatpush.bf16.msra.mxu0 %v1801
        %1941 = vmatpush.bf16.msra.mxu0 %v1800
        %1942 = vmatpush.bf16.msra.mxu0 %v1799
        %1943 = vmatpush.bf16.msra.mxu0 %v1798
        %1944 = vmatpush.bf16.msra.mxu0 %v1797
        %1945 = vmatpush.bf16.msra.mxu0 %v1796
        %1946 = vmatpush.bf16.msra.mxu0 %v1795
        %1947 = vmatmul.bf16.gmra.mxu0 %v1381
        %v1948 = vpop.f32.mrf.mxu0
        %v1949 = vadd.f32 %v1183, %v1948
        %v1950 = vpop.f32.mrf.mxu0
        %v1951 = vadd.f32 %v1183, %v1950
        %1952 = vmatmul.bf16.gmra.mxu0 %v1390
        %v1953 = vpop.f32.mrf.mxu0
        %v1954 = vadd.f32 %v1183, %v1953
        %v1955 = vpop.f32.mrf.mxu0
        %v1956 = vadd.f32 %v1183, %v1955
        %1957 = vmatmul.bf16.gmra.mxu0 %v1399
        %v1958 = vpop.f32.mrf.mxu0
        %v1959 = vadd.f32 %v1183, %v1958
        %v1960 = vpop.f32.mrf.mxu0
        %v1961 = vadd.f32 %v1183, %v1960
        %1962 = vmatmul.bf16.gmra.mxu0 %v1408
        %v1963 = vpop.f32.mrf.mxu0
        %v1964 = vadd.f32 %v1183, %v1963
        %v1965 = vpop.f32.mrf.mxu0
        %v1966 = vadd.f32 %v1183, %v1965
        %1967 = vmatmul.bf16.gmra.mxu0 %v1417
        %v1968 = vpop.f32.mrf.mxu0
        %v1969 = vadd.f32 %v1183, %v1968
        %v1970 = vpop.f32.mrf.mxu0
        %v1971 = vadd.f32 %v1183, %v1970
        %1972 = vmatmul.bf16.gmra.mxu0 %v1426
        %v1973 = vpop.f32.mrf.mxu0
        %v1974 = vadd.f32 %v1183, %v1973
        %v1975 = vpop.f32.mrf.mxu0
        %v1976 = vadd.f32 %v1183, %v1975
        %1977 = vmatmul.bf16.gmra.mxu0 %v1435
        %v1978 = vpop.f32.mrf.mxu0
        %v1979 = vadd.f32 %v1183, %v1978
        %v1980 = vpop.f32.mrf.mxu0
        %v1981 = vadd.f32 %v1183, %v1980
        %1982 = vdwg.mxu0
        %1983 = vmatpush.bf16.msra.mxu0 %v1810
        %1984 = vmatpush.bf16.msra.mxu0 %v1809
        %1985 = vmatpush.bf16.msra.mxu0 %v1808
        %1986 = vmatpush.bf16.msra.mxu0 %v1807
        %1987 = vmatpush.bf16.msra.mxu0 %v1806
        %1988 = vmatpush.bf16.msra.mxu0 %v1805
        %1989 = vmatpush.bf16.msra.mxu0 %v1804
        %1990 = vmatpush.bf16.msra.mxu0 %v1803
        %1991 = vmatmul.bf16.gmra.mxu0 %v1382
        %v1992 = vpop.f32.mrf.mxu0
        %v1993 = vadd.f32 %v1949, %v1992
        %v1994 = vpop.f32.mrf.mxu0
        %v1995 = vadd.f32 %v1951, %v1994
        %1996 = vmatmul.bf16.gmra.mxu0 %v1391
        %v1997 = vpop.f32.mrf.mxu0
        %v1998 = vadd.f32 %v1954, %v1997
        %v1999 = vpop.f32.mrf.mxu0
        %v2000 = vadd.f32 %v1956, %v1999
        %2001 = vmatmul.bf16.gmra.mxu0 %v1400
        %v2002 = vpop.f32.mrf.mxu0
        %v2003 = vadd.f32 %v1959, %v2002
        %v2004 = vpop.f32.mrf.mxu0
        %v2005 = vadd.f32 %v1961, %v2004
        %2006 = vmatmul.bf16.gmra.mxu0 %v1409
        %v2007 = vpop.f32.mrf.mxu0
        %v2008 = vadd.f32 %v1964, %v2007
        %v2009 = vpop.f32.mrf.mxu0
        %v2010 = vadd.f32 %v1966, %v2009
        %2011 = vmatmul.bf16.gmra.mxu0 %v1418
        %v2012 = vpop.f32.mrf.mxu0
        %v2013 = vadd.f32 %v1969, %v2012
        %v2014 = vpop.f32.mrf.mxu0
        %v2015 = vadd.f32 %v1971, %v2014
        %2016 = vmatmul.bf16.gmra.mxu0 %v1427
        %v2017 = vpop.f32.mrf.mxu0
        %v2018 = vadd.f32 %v1974, %v2017
        %v2019 = vpop.f32.mrf.mxu0
        %v2020 = vadd.f32 %v1976, %v2019
        %2021 = vmatmul.bf16.gmra.mxu0 %v1436
        %v2022 = vpop.f32.mrf.mxu0
        %v2023 = vadd.f32 %v1979, %v2022
        %v2024 = vpop.f32.mrf.mxu0
        %v2025 = vadd.f32 %v1981, %v2024
        %2026 = vdwg.mxu0
        %2027 = vmatpush.bf16.msra.mxu0 %v1818
        %2028 = vmatpush.bf16.msra.mxu0 %v1817
        %2029 = vmatpush.bf16.msra.mxu0 %v1816
        %2030 = vmatpush.bf16.msra.mxu0 %v1815
        %2031 = vmatpush.bf16.msra.mxu0 %v1814
        %2032 = vmatpush.bf16.msra.mxu0 %v1813
        %2033 = vmatpush.bf16.msra.mxu0 %v1812
        %2034 = vmatpush.bf16.msra.mxu0 %v1811
        %2035 = vmatmul.bf16.gmra.mxu0 %v1383
        %v2036 = vpop.f32.mrf.mxu0
        %v2037 = vadd.f32 %v1993, %v2036
        %v2038 = vpop.f32.mrf.mxu0
        %v2039 = vadd.f32 %v1995, %v2038
        %2040 = vmatmul.bf16.gmra.mxu0 %v1392
        %v2041 = vpop.f32.mrf.mxu0
        %v2042 = vadd.f32 %v1998, %v2041
        %v2043 = vpop.f32.mrf.mxu0
        %v2044 = vadd.f32 %v2000, %v2043
        %2045 = vmatmul.bf16.gmra.mxu0 %v1401
        %v2046 = vpop.f32.mrf.mxu0
        %v2047 = vadd.f32 %v2003, %v2046
        %v2048 = vpop.f32.mrf.mxu0
        %v2049 = vadd.f32 %v2005, %v2048
        %2050 = vmatmul.bf16.gmra.mxu0 %v1410
        %v2051 = vpop.f32.mrf.mxu0
        %v2052 = vadd.f32 %v2008, %v2051
        %v2053 = vpop.f32.mrf.mxu0
        %v2054 = vadd.f32 %v2010, %v2053
        %2055 = vmatmul.bf16.gmra.mxu0 %v1419
        %v2056 = vpop.f32.mrf.mxu0
        %v2057 = vadd.f32 %v2013, %v2056
        %v2058 = vpop.f32.mrf.mxu0
        %v2059 = vadd.f32 %v2015, %v2058
        %2060 = vmatmul.bf16.gmra.mxu0 %v1428
        %v2061 = vpop.f32.mrf.mxu0
        %v2062 = vadd.f32 %v2018, %v2061
        %v2063 = vpop.f32.mrf.mxu0
        %v2064 = vadd.f32 %v2020, %v2063
        %2065 = vmatmul.bf16.gmra.mxu0 %v1437
        %v2066 = vpop.f32.mrf.mxu0
        %v2067 = vadd.f32 %v2023, %v2066
        %v2068 = vpop.f32.mrf.mxu0
        %v2069 = vadd.f32 %v2025, %v2068
        %2070 = vdwg.mxu0
        %2071 = vmatpush.bf16.msra.mxu0 %v1826
        %2072 = vmatpush.bf16.msra.mxu0 %v1825
        %2073 = vmatpush.bf16.msra.mxu0 %v1824
        %2074 = vmatpush.bf16.msra.mxu0 %v1823
        %2075 = vmatpush.bf16.msra.mxu0 %v1822
        %2076 = vmatpush.bf16.msra.mxu0 %v1821
        %2077 = vmatpush.bf16.msra.mxu0 %v1820
        %2078 = vmatpush.bf16.msra.mxu0 %v1819
        %2079 = vmatmul.bf16.gmra.mxu0 %v1384
        %v2080 = vpop.f32.mrf.mxu0
        %v2081 = vadd.f32 %v2037, %v2080
        %v2082 = vpop.f32.mrf.mxu0
        %v2083 = vadd.f32 %v2039, %v2082
        %2084 = vmatmul.bf16.gmra.mxu0 %v1393
        %v2085 = vpop.f32.mrf.mxu0
        %v2086 = vadd.f32 %v2042, %v2085
        %v2087 = vpop.f32.mrf.mxu0
        %v2088 = vadd.f32 %v2044, %v2087
        %2089 = vmatmul.bf16.gmra.mxu0 %v1402
        %v2090 = vpop.f32.mrf.mxu0
        %v2091 = vadd.f32 %v2047, %v2090
        %v2092 = vpop.f32.mrf.mxu0
        %v2093 = vadd.f32 %v2049, %v2092
        %2094 = vmatmul.bf16.gmra.mxu0 %v1411
        %v2095 = vpop.f32.mrf.mxu0
        %v2096 = vadd.f32 %v2052, %v2095
        %v2097 = vpop.f32.mrf.mxu0
        %v2098 = vadd.f32 %v2054, %v2097
        %2099 = vmatmul.bf16.gmra.mxu0 %v1420
        %v2100 = vpop.f32.mrf.mxu0
        %v2101 = vadd.f32 %v2057, %v2100
        %v2102 = vpop.f32.mrf.mxu0
        %v2103 = vadd.f32 %v2059, %v2102
        %2104 = vmatmul.bf16.gmra.mxu0 %v1429
        %v2105 = vpop.f32.mrf.mxu0
        %v2106 = vadd.f32 %v2062, %v2105
        %v2107 = vpop.f32.mrf.mxu0
        %v2108 = vadd.f32 %v2064, %v2107
        %2109 = vmatmul.bf16.gmra.mxu0 %v1438
        %v2110 = vpop.f32.mrf.mxu0
        %v2111 = vadd.f32 %v2067, %v2110
        %v2112 = vpop.f32.mrf.mxu0
        %v2113 = vadd.f32 %v2069, %v2112
        %2114 = vdwg.mxu0
        %2115 = vmatpush.bf16.msra.mxu0 %v1834
        %2116 = vmatpush.bf16.msra.mxu0 %v1833
        %2117 = vmatpush.bf16.msra.mxu0 %v1832
        %2118 = vmatpush.bf16.msra.mxu0 %v1831
        %2119 = vmatpush.bf16.msra.mxu0 %v1830
        %2120 = vmatpush.bf16.msra.mxu0 %v1829
        %2121 = vmatpush.bf16.msra.mxu0 %v1828
        %2122 = vmatpush.bf16.msra.mxu0 %v1827
        %2123 = vmatmul.bf16.gmra.mxu0 %v1385
        %v2124 = vpop.f32.mrf.mxu0
        %v2125 = vadd.f32 %v2081, %v2124
        %v2126 = vpop.f32.mrf.mxu0
        %v2127 = vadd.f32 %v2083, %v2126
        %2128 = vmatmul.bf16.gmra.mxu0 %v1394
        %v2129 = vpop.f32.mrf.mxu0
        %v2130 = vadd.f32 %v2086, %v2129
        %v2131 = vpop.f32.mrf.mxu0
        %v2132 = vadd.f32 %v2088, %v2131
        %2133 = vmatmul.bf16.gmra.mxu0 %v1403
        %v2134 = vpop.f32.mrf.mxu0
        %v2135 = vadd.f32 %v2091, %v2134
        %v2136 = vpop.f32.mrf.mxu0
        %v2137 = vadd.f32 %v2093, %v2136
        %2138 = vmatmul.bf16.gmra.mxu0 %v1412
        %v2139 = vpop.f32.mrf.mxu0
        %v2140 = vadd.f32 %v2096, %v2139
        %v2141 = vpop.f32.mrf.mxu0
        %v2142 = vadd.f32 %v2098, %v2141
        %2143 = vmatmul.bf16.gmra.mxu0 %v1421
        %v2144 = vpop.f32.mrf.mxu0
        %v2145 = vadd.f32 %v2101, %v2144
        %v2146 = vpop.f32.mrf.mxu0
        %v2147 = vadd.f32 %v2103, %v2146
        %2148 = vmatmul.bf16.gmra.mxu0 %v1430
        %v2149 = vpop.f32.mrf.mxu0
        %v2150 = vadd.f32 %v2106, %v2149
        %v2151 = vpop.f32.mrf.mxu0
        %v2152 = vadd.f32 %v2108, %v2151
        %2153 = vmatmul.bf16.gmra.mxu0 %v1439
        %v2154 = vpop.f32.mrf.mxu0
        %v2155 = vadd.f32 %v2111, %v2154
        %v2156 = vpop.f32.mrf.mxu0
        %v2157 = vadd.f32 %v2113, %v2156
        %2158 = vdwg.mxu0
        %2159 = vmatpush.bf16.msra.mxu0 %v1842
        %2160 = vmatpush.bf16.msra.mxu0 %v1841
        %2161 = vmatpush.bf16.msra.mxu0 %v1840
        %2162 = vmatpush.bf16.msra.mxu0 %v1839
        %2163 = vmatpush.bf16.msra.mxu0 %v1838
        %2164 = vmatpush.bf16.msra.mxu0 %v1837
        %2165 = vmatpush.bf16.msra.mxu0 %v1836
        %2166 = vmatpush.bf16.msra.mxu0 %v1835
        %2167 = vmatmul.bf16.gmra.mxu0 %v1386
        %v2168 = vpop.f32.mrf.mxu0
        %v2169 = vadd.f32 %v2125, %v2168
        %v2170 = vpop.f32.mrf.mxu0
        %v2171 = vadd.f32 %v2127, %v2170
        %2172 = vmatmul.bf16.gmra.mxu0 %v1395
        %v2173 = vpop.f32.mrf.mxu0
        %v2174 = vadd.f32 %v2130, %v2173
        %v2175 = vpop.f32.mrf.mxu0
        %v2176 = vadd.f32 %v2132, %v2175
        %2177 = vmatmul.bf16.gmra.mxu0 %v1404
        %v2178 = vpop.f32.mrf.mxu0
        %v2179 = vadd.f32 %v2135, %v2178
        %v2180 = vpop.f32.mrf.mxu0
        %v2181 = vadd.f32 %v2137, %v2180
        %2182 = vmatmul.bf16.gmra.mxu0 %v1413
        %v2183 = vpop.f32.mrf.mxu0
        %v2184 = vadd.f32 %v2140, %v2183
        %v2185 = vpop.f32.mrf.mxu0
        %v2186 = vadd.f32 %v2142, %v2185
        %2187 = vmatmul.bf16.gmra.mxu0 %v1422
        %v2188 = vpop.f32.mrf.mxu0
        %v2189 = vadd.f32 %v2145, %v2188
        %v2190 = vpop.f32.mrf.mxu0
        %v2191 = vadd.f32 %v2147, %v2190
        %2192 = vmatmul.bf16.gmra.mxu0 %v1431
        %v2193 = vpop.f32.mrf.mxu0
        %v2194 = vadd.f32 %v2150, %v2193
        %v2195 = vpop.f32.mrf.mxu0
        %v2196 = vadd.f32 %v2152, %v2195
        %2197 = vmatmul.bf16.gmra.mxu0 %v1440
        %v2198 = vpop.f32.mrf.mxu0
        %v2199 = vadd.f32 %v2155, %v2198
        %v2200 = vpop.f32.mrf.mxu0
        %v2201 = vadd.f32 %v2157, %v2200
        %2202 = vdwg.mxu0
        %2203 = vmatpush.bf16.msra.mxu0 %v1850
        %2204 = vmatpush.bf16.msra.mxu0 %v1849
        %2205 = vmatpush.bf16.msra.mxu0 %v1848
        %2206 = vmatpush.bf16.msra.mxu0 %v1847
        %2207 = vmatpush.bf16.msra.mxu0 %v1846
        %2208 = vmatpush.bf16.msra.mxu0 %v1845
        %2209 = vmatpush.bf16.msra.mxu0 %v1844
        %2210 = vmatpush.bf16.msra.mxu0 %v1843
        %2211 = vmatmul.bf16.gmra.mxu0 %v1387
        %v2212 = vpop.f32.mrf.mxu0
        %v2213 = vadd.f32 %v2169, %v2212
        %v2214 = vpop.f32.mrf.mxu0
        %v2215 = vadd.f32 %v2171, %v2214
        %2216 = vmatmul.bf16.gmra.mxu0 %v1396
        %v2217 = vpop.f32.mrf.mxu0
        %v2218 = vadd.f32 %v2174, %v2217
        %v2219 = vpop.f32.mrf.mxu0
        %v2220 = vadd.f32 %v2176, %v2219
        %2221 = vmatmul.bf16.gmra.mxu0 %v1405
        %v2222 = vpop.f32.mrf.mxu0
        %v2223 = vadd.f32 %v2179, %v2222
        %v2224 = vpop.f32.mrf.mxu0
        %v2225 = vadd.f32 %v2181, %v2224
        %2226 = vmatmul.bf16.gmra.mxu0 %v1414
        %v2227 = vpop.f32.mrf.mxu0
        %v2228 = vadd.f32 %v2184, %v2227
        %v2229 = vpop.f32.mrf.mxu0
        %v2230 = vadd.f32 %v2186, %v2229
        %2231 = vmatmul.bf16.gmra.mxu0 %v1423
        %v2232 = vpop.f32.mrf.mxu0
        %v2233 = vadd.f32 %v2189, %v2232
        %v2234 = vpop.f32.mrf.mxu0
        %v2235 = vadd.f32 %v2191, %v2234
        %2236 = vmatmul.bf16.gmra.mxu0 %v1432
        %v2237 = vpop.f32.mrf.mxu0
        %v2238 = vadd.f32 %v2194, %v2237
        %v2239 = vpop.f32.mrf.mxu0
        %v2240 = vadd.f32 %v2196, %v2239
        %2241 = vmatmul.bf16.gmra.mxu0 %v1441
        %v2242 = vpop.f32.mrf.mxu0
        %v2243 = vadd.f32 %v2199, %v2242
        %v2244 = vpop.f32.mrf.mxu0
        %v2245 = vadd.f32 %v2201, %v2244
        %2246 = vdwg.mxu0
        %2247 = vmatpush.bf16.msra.mxu0 %v1858
        %2248 = vmatpush.bf16.msra.mxu0 %v1857
        %2249 = vmatpush.bf16.msra.mxu0 %v1856
        %2250 = vmatpush.bf16.msra.mxu0 %v1855
        %2251 = vmatpush.bf16.msra.mxu0 %v1854
        %2252 = vmatpush.bf16.msra.mxu0 %v1853
        %2253 = vmatpush.bf16.msra.mxu0 %v1852
        %2254 = vmatpush.bf16.msra.mxu0 %v1851
        %2255 = vmatmul.bf16.gmra.mxu0 %v1388
        %v2256 = vpop.f32.mrf.mxu0
        %v2257 = vadd.f32 %v2213, %v2256
        %v2258 = vpop.f32.mrf.mxu0
        %v2259 = vadd.f32 %v2215, %v2258
        %2260 = vmatmul.bf16.gmra.mxu0 %v1397
        %v2261 = vpop.f32.mrf.mxu0
        %v2262 = vadd.f32 %v2218, %v2261
        %v2263 = vpop.f32.mrf.mxu0
        %v2264 = vadd.f32 %v2220, %v2263
        %2265 = vmatmul.bf16.gmra.mxu0 %v1406
        %v2266 = vpop.f32.mrf.mxu0
        %v2267 = vadd.f32 %v2223, %v2266
        %v2268 = vpop.f32.mrf.mxu0
        %v2269 = vadd.f32 %v2225, %v2268
        %2270 = vmatmul.bf16.gmra.mxu0 %v1415
        %v2271 = vpop.f32.mrf.mxu0
        %v2272 = vadd.f32 %v2228, %v2271
        %v2273 = vpop.f32.mrf.mxu0
        %v2274 = vadd.f32 %v2230, %v2273
        %2275 = vmatmul.bf16.gmra.mxu0 %v1424
        %v2276 = vpop.f32.mrf.mxu0
        %v2277 = vadd.f32 %v2233, %v2276
        %v2278 = vpop.f32.mrf.mxu0
        %v2279 = vadd.f32 %v2235, %v2278
        %2280 = vmatmul.bf16.gmra.mxu0 %v1433
        %v2281 = vpop.f32.mrf.mxu0
        %v2282 = vadd.f32 %v2238, %v2281
        %v2283 = vpop.f32.mrf.mxu0
        %v2284 = vadd.f32 %v2240, %v2283
        %2285 = vmatmul.bf16.gmra.mxu0 %v1442
        %v2286 = vpop.f32.mrf.mxu0
        %v2287 = vadd.f32 %v2243, %v2286
        %v2288 = vpop.f32.mrf.mxu0
        %v2289 = vadd.f32 %v2245, %v2288
        %2290 = vdwg.mxu0
        %2291 = vmatpush.bf16.msra.mxu0 %v1866
        %2292 = vmatpush.bf16.msra.mxu0 %v1865
        %2293 = vmatpush.bf16.msra.mxu0 %v1864
        %2294 = vmatpush.bf16.msra.mxu0 %v1863
        %2295 = vmatpush.bf16.msra.mxu0 %v1862
        %2296 = vmatpush.bf16.msra.mxu0 %v1861
        %2297 = vmatpush.bf16.msra.mxu0 %v1860
        %2298 = vmatpush.bf16.msra.mxu0 %v1859
        %2299 = vmatmul.bf16.gmra.mxu0 %v1389
        %v2300 = vpop.f32.mrf.mxu0
        %v2301 = vadd.f32 %v2257, %v2300
        %v2302 = vpop.f32.mrf.mxu0
        %v2303 = vadd.f32 %v2259, %v2302
        %2304 = vmatmul.bf16.gmra.mxu0 %v1398
        %v2305 = vpop.f32.mrf.mxu0
        %v2306 = vadd.f32 %v2262, %v2305
        %v2307 = vpop.f32.mrf.mxu0
        %v2308 = vadd.f32 %v2264, %v2307
        %2309 = vmatmul.bf16.gmra.mxu0 %v1407
        %v2310 = vpop.f32.mrf.mxu0
        %v2311 = vadd.f32 %v2267, %v2310
        %v2312 = vpop.f32.mrf.mxu0
        %v2313 = vadd.f32 %v2269, %v2312
        %2314 = vmatmul.bf16.gmra.mxu0 %v1416
        %v2315 = vpop.f32.mrf.mxu0
        %v2316 = vadd.f32 %v2272, %v2315
        %v2317 = vpop.f32.mrf.mxu0
        %v2318 = vadd.f32 %v2274, %v2317
        %2319 = vmatmul.bf16.gmra.mxu0 %v1425
        %v2320 = vpop.f32.mrf.mxu0
        %v2321 = vadd.f32 %v2277, %v2320
        %v2322 = vpop.f32.mrf.mxu0
        %v2323 = vadd.f32 %v2279, %v2322
        %2324 = vmatmul.bf16.gmra.mxu0 %v1434
        %v2325 = vpop.f32.mrf.mxu0
        %v2326 = vadd.f32 %v2282, %v2325
        %v2327 = vpop.f32.mrf.mxu0
        %v2328 = vadd.f32 %v2284, %v2327
        %2329 = vmatmul.bf16.gmra.mxu0 %v1443
        %v2330 = vpop.f32.mrf.mxu0
        %v2331 = vadd.f32 %v2287, %v2330
        %v2332 = vpop.f32.mrf.mxu0
        %v2333 = vadd.f32 %v2289, %v2332
        %2334 = vdwg.mxu0
        %v2335 = vmax.f32 %v2301, 0.0
        %v2336 = vmax.f32 %v2303, 0.0
        %v2337 = vmax.f32 %v2306, 0.0
        %v2338 = vmax.f32 %v2308, 0.0
        %v2339 = vmax.f32 %v2311, 0.0
        %v2340 = vmax.f32 %v2313, 0.0
        %v2341 = vmax.f32 %v2316, 0.0
        %v2342 = vmax.f32 %v2318, 0.0
        %v2343 = vmax.f32 %v2321, 0.0
        %v2344 = vmax.f32 %v2323, 0.0
        %v2345 = vmax.f32 %v2326, 0.0
        %v2346 = vmax.f32 %v2328, 0.0
        %v2347 = vmax.f32 %v2331, 0.0
        %v2348 = vmax.f32 %v2333, 0.0
        %v2349 = vpack.c.bf16 %v2336, %v2335
        %v2350 = vpack.c.bf16 %v2338, %v2337
        %v2351 = vpack.c.bf16 %v2340, %v2339
        %v2352 = vpack.c.bf16 %v2342, %v2341
        %v2353 = vpack.c.bf16 %v2344, %v2343
        %v2354 = vpack.c.bf16 %v2346, %v2345
        %v2355 = vpack.c.bf16 %v2348, %v2347
        %v2356 = vld [vmem:[%s6] sm:$0xf]
        %v2357 = vld [vmem:[%s6 + $0x4] sm:$0xf]
        %v2358 = vld [vmem:[%s6 + $0x8] sm:$0xf]
        %v2359 = vld [vmem:[%s6 + $0xc] sm:$0xf]
        %v2360 = vld [vmem:[%s6 + $0x10] sm:$0xf]
        %v2361 = vld [vmem:[%s6 + $0x14] sm:$0xf]
        %v2362 = vld [vmem:[%s6 + $0x18] sm:$0xf]
        %v2363 = vld [vmem:[%s6 + $0x1c] sm:$0xf]
        %v2364 = vld [vmem:[%s6 + $0x20] sm:$0xf]
        %v2365 = vld [vmem:[%s6 + $0x24] sm:$0xf]
        %v2366 = vld [vmem:[%s6 + $0x28] sm:$0xf]
        %v2367 = vld [vmem:[%s6 + $0x2c] sm:$0xf]
        %v2368 = vld [vmem:[%s6 + $0x30] sm:$0xf]
        %v2369 = vld [vmem:[%s6 + $0x34] sm:$0xf]
        %v2370 = vld [vmem:[%s6 + $0x38] sm:$0xf]
        %v2371 = vld [vmem:[%s6 + $0x3c] sm:$0xf]
        %v2372 = vld [vmem:[%s7] sm:$0x1]
        %v2374 = vperm.slane %v2372, 0
        %v2392 = vunpack.c.l.b16 %v2356
        %v2393 = vunpack.c.l.b16 %v2357
        %v2394 = vunpack.c.l.b16 %v2358
        %v2395 = vunpack.c.l.b16 %v2359
        %v2396 = vunpack.c.l.b16 %v2360
        %v2397 = vunpack.c.l.b16 %v2361
        %v2398 = vunpack.c.l.b16 %v2362
        %v2399 = vunpack.c.l.b16 %v2363
        %v2400 = vunpack.c.l.b16 %v2364
        %v2401 = vunpack.c.l.b16 %v2365
        %v2402 = vunpack.c.l.b16 %v2366
        %v2403 = vunpack.c.l.b16 %v2367
        %v2404 = vunpack.c.l.b16 %v2368
        %v2405 = vunpack.c.l.b16 %v2369
        %v2406 = vunpack.c.l.b16 %v2370
        %v2407 = vunpack.c.l.b16 %v2371
        %v2408 = vpack.c.b16 %v2393, %v2392
        %v2409 = vpack.c.b16 %v2395, %v2394
        %v2410 = vpack.c.b16 %v2397, %v2396
        %v2411 = vpack.c.b16 %v2399, %v2398
        %v2412 = vpack.c.b16 %v2401, %v2400
        %v2413 = vpack.c.b16 %v2403, %v2402
        %v2414 = vpack.c.b16 %v2405, %v2404
        %v2415 = vpack.c.b16 %v2407, %v2406
        %2424 = vmatpush.bf16.msra.mxu0 %v2415
        %2425 = vmatpush.bf16.msra.mxu0 %v2414
        %2426 = vmatpush.bf16.msra.mxu0 %v2413
        %2427 = vmatpush.bf16.msra.mxu0 %v2412
        %2428 = vmatpush.bf16.msra.mxu0 %v2411
        %2429 = vmatpush.bf16.msra.mxu0 %v2410
        %2430 = vmatpush.bf16.msra.mxu0 %v2409
        %2431 = vmatpush.bf16.msra.mxu0 %v2408
        %2432 = vmatmul.bf16.gmra.mxu0 %v2349
        %v2433 = vpop.f32.mrf.mxu0
        %v2434 = vadd.f32 %v2374, %v2433
        %v2435 = vpop.f32.mrf.mxu0
        %v2436 = vadd.f32 %v2374, %v2435
        %2437 = vmatmul.bf16.gmra.mxu0 %v2350
        %v2438 = vpop.f32.mrf.mxu0
        %v2439 = vadd.f32 %v2374, %v2438
        %v2440 = vpop.f32.mrf.mxu0
        %v2441 = vadd.f32 %v2374, %v2440
        %2442 = vmatmul.bf16.gmra.mxu0 %v2351
        %v2443 = vpop.f32.mrf.mxu0
        %v2444 = vadd.f32 %v2374, %v2443
        %v2445 = vpop.f32.mrf.mxu0
        %v2446 = vadd.f32 %v2374, %v2445
        %2447 = vmatmul.bf16.gmra.mxu0 %v2352
        %v2448 = vpop.f32.mrf.mxu0
        %v2449 = vadd.f32 %v2374, %v2448
        %v2450 = vpop.f32.mrf.mxu0
        %v2451 = vadd.f32 %v2374, %v2450
        %2452 = vmatmul.bf16.gmra.mxu0 %v2353
        %v2453 = vpop.f32.mrf.mxu0
        %v2454 = vadd.f32 %v2374, %v2453
        %v2455 = vpop.f32.mrf.mxu0
        %v2456 = vadd.f32 %v2374, %v2455
        %2457 = vmatmul.bf16.gmra.mxu0 %v2354
        %v2458 = vpop.f32.mrf.mxu0
        %v2459 = vadd.f32 %v2374, %v2458
        %v2460 = vpop.f32.mrf.mxu0
        %v2461 = vadd.f32 %v2374, %v2460
        %2462 = vmatmul.bf16.gmra.mxu0 %v2355
        %v2463 = vpop.f32.mrf.mxu0
        %v2464 = vadd.f32 %v2374, %v2463
        %v2465 = vpop.f32.mrf.mxu0
        %v2466 = vadd.f32 %v2374, %v2465
        %2467 = vdwg.mxu0
        %v2468 = vld [vmem:[%s380] sm:$0xf]
        %v2469 = vld [vmem:[%s380 + $0x4] sm:$0xf]
        %v2470 = vunpack.c.l.bf16 %v2468
        %v2471 = vunpack.c.l.bf16 %v2469
        %v2472 = vadd.f32 %v2464, %v2470
        %v2473 = vadd.f32 %v2466, %v2471
        %s2474 = scalar_lea.vmem %s368, 8
        %v2475 = vld [vmem:[%s2474] sm:$0xf]
        %v2476 = vld [vmem:[%s2474 + $0x4] sm:$0xf]
        %v2477 = vld [vmem:[%s2474 + $0x8] sm:$0xf]
        %v2478 = vld [vmem:[%s2474 + $0xc] sm:$0xf]
        %v2479 = vld [vmem:[%s2474 + $0x10] sm:$0xf]
        %v2480 = vld [vmem:[%s2474 + $0x14] sm:$0xf]
        %v2481 = vld [vmem:[%s2474 + $0x18] sm:$0xf]
        %v2482 = vld [vmem:[%s2474 + $0x1c] sm:$0xf]
        %v2483 = vld [vmem:[%s2474 + $0x20] sm:$0xf]
        %v2484 = vld [vmem:[%s2474 + $0x24] sm:$0xf]
        %v2485 = vld [vmem:[%s2474 + $0x28] sm:$0xf]
        %v2486 = vld [vmem:[%s2474 + $0x2c] sm:$0xf]
        %v2487 = vunpack.c.l.bf16 %v2475
        %v2488 = vunpack.c.l.bf16 %v2476
        %v2489 = vunpack.c.l.bf16 %v2477
        %v2490 = vunpack.c.l.bf16 %v2478
        %v2491 = vunpack.c.l.bf16 %v2479
        %v2492 = vunpack.c.l.bf16 %v2480
        %v2493 = vunpack.c.l.bf16 %v2481
        %v2494 = vunpack.c.l.bf16 %v2482
        %v2495 = vunpack.c.l.bf16 %v2483
        %v2496 = vunpack.c.l.bf16 %v2484
        %v2497 = vunpack.c.l.bf16 %v2485
        %v2498 = vunpack.c.l.bf16 %v2486
        %v2499 = vadd.f32 %v2434, %v2487
        %v2500 = vadd.f32 %v2436, %v2488
        %v2501 = vadd.f32 %v2439, %v2489
        %v2502 = vadd.f32 %v2441, %v2490
        %v2503 = vadd.f32 %v2444, %v2491
        %v2504 = vadd.f32 %v2446, %v2492
        %v2505 = vadd.f32 %v2449, %v2493
        %v2506 = vadd.f32 %v2451, %v2494
        %v2507 = vadd.f32 %v2454, %v2495
        %v2508 = vadd.f32 %v2456, %v2496
        %v2509 = vadd.f32 %v2459, %v2497
        %v2510 = vadd.f32 %v2461, %v2498
        %2511 = vst.msk [vmem:[%s358] sm:$0xff] %vm446, %v2499
        %2512 = vst.msk [vmem:[%s358 + $0x8] sm:$0xff] %vm446, %v2500
        %2513 = vst.msk [vmem:[%s358 + $0x10] sm:$0xff] %vm446, %v2501
        %2514 = vst.msk [vmem:[%s358 + $0x18] sm:$0xff] %vm446, %v2502
        %2515 = vst.msk [vmem:[%s358 + $0x20] sm:$0xff] %vm446, %v2503
        %2516 = vst.msk [vmem:[%s358 + $0x28] sm:$0xff] %vm446, %v2504
        %2517 = vst.msk [vmem:[%s358 + $0x30] sm:$0xff] %vm446, %v2505
        %2518 = vst.msk [vmem:[%s358 + $0x38] sm:$0xff] %vm446, %v2506
        %2519 = vst.msk [vmem:[%s358 + $0x40] sm:$0xff] %vm446, %v2507
        %2520 = vst.msk [vmem:[%s358 + $0x48] sm:$0xff] %vm446, %v2508
        %2521 = vst.msk [vmem:[%s358 + $0x50] sm:$0xff] %vm446, %v2509
        %2522 = vst.msk [vmem:[%s358 + $0x58] sm:$0xff] %vm446, %v2510
        %s2523 = scalar_lea.vmem %s358, 96 [#allocation4]
        %2524 = vst.msk [vmem:[%s2523] sm:$0xff] %vm446, %v2472
        %2525 = vst.msk [vmem:[%s2523 + $0x8] sm:$0xff] %vm446, %v2473
        %s2526 = sand.u32 %s228, 1
        %s2527 = scalar_lea.sflag [#allocation5], %s2526
        %s2528 = sand.u32 %s228, 1
        %s2529 = smul.addr %s2528, 112
        %s2530 = scalar_lea.vmem [#allocation4], %s2529
        // Predicated region
        $region53: #{tpu_custom_call.1} parent=51 // pred_check
          %p2531 = pneg %p238
        $region54: #{tpu_custom_call.1} parent=51 // pred_check_branch
          %2533 = sbr.rel (%p2531) target = $region56
        $region55: #{tpu_custom_call.1} parent=51 // pred_region
          %s2534 = smul.u32 7, %s27
          %2536 = vsyncadd %s2527, 0
          %s2537 = smul.addr %s2534, 2
          %s2538 = smul.addr %s26, 28
          %s2539 = sadd.s32 %s2537, %s2538
          %s2540 = smul.addr %s2539, 8
          %s2541 = scalar_lea.hbm %s8, %s2540
          %s2542 = sshll.u32 %s2530, 4
          %s2543 = int_to_ptr.vmem [resolvable:$true] %s2542
          %s2544 = sshll.u32 %s2541, 4
          %s2545 = int_to_ptr.hbm [resolvable:$true] %s2544
          %2550 = dma.vmem_to_hbm [thread:$0]  %s2543, 1792, %s2545, %s2527, 128, 128, 8
        $region56: #{tpu_custom_call.1} parent=51 // pred_fallthru
          _
      $region52: #{tpu_custom_call.1} parent=5 // pred_fallthru
        _
      %p2551 = scmp.le.s32.totalorder 2, %s17
      // Predicated region
      $region57: #{tpu_custom_call.1} parent=5 // pred_check
        %p2552 = pneg %p2551
      $region58: #{tpu_custom_call.1} parent=5 // pred_check_branch
        %2554 = sbr.rel (%p2552) target = $region60
      $region59: #{tpu_custom_call.1} parent=5 // pred_region
        %s2555 = ssub.s32 %s17, 2
        // Predicated region
        $region61: #{tpu_custom_call.1} parent=59 // pred_check
          %p2556 = pneg %p244
        $region62: #{tpu_custom_call.1} parent=59 // pred_check_branch
          %2558 = sbr.rel (%p2556) target = $region64
        $region63: #{tpu_custom_call.1} parent=59 // pred_region
          %s2559 = sand.u32 %s229, 1
          %s2560 = scalar_lea.sflag [#allocation5], %s2559
          %s2561 = sand.u32 %s229, 1
          %s2562 = smul.addr %s2561, 112
          %s2563 = scalar_lea.vmem [#allocation4], %s2562
          %2565 = dma.done %s2560, 1792
        $region64: #{tpu_custom_call.1} parent=59 // pred_fallthru
          _
      $region60: #{tpu_custom_call.1} parent=5 // pred_fallthru
        _
    $region6: #{tpu_custom_call.1} parent=1 // loop_footer
      %s21 = sadd.s32 1, %s17
    $region7: #{tpu_custom_call.1} parent=1 // loop_footer_branch
      %16 = sbr.rel target = $region3
    $region8: #{tpu_custom_call.1} parent=1 // loop_exit
      _
    %2566 = vsyncpa [#allocation5], 1
    %s2567 = scalar_lea.sflag [#allocation5], 1
    %2568 = vsyncpa %s2567, 1

</llo_original>
